<compile_context>
chip_gen: v6e
topology: v6e:2x2x1
jax: 0.10.0
libtpu: 0.0.40
codegen_flags: <defaults>
</compile_context>

<pallas_src>
import functools

import jax
import jax.numpy as jnp
from jax import lax
from jax.experimental import pallas as pl
from jax.experimental.pallas import tpu as pltpu


def _pcblock1_kernel(xg_ref, wk_ref, bconv_ref, w1_ref, b1_ref, w2_ref, b2_ref,
                     out_ref, slab_ref, y_ref, yb_ref, a_ref, *, c, h, w, tq):
    hw = h * w

    # Column masks that emulate the zero width-padding for the +/-1 width taps
    # (the input is only zero-padded in H; width wrap is killed here).
    col = lax.broadcasted_iota(jnp.int32, (1, hw), 1) % w
    left_ok = (col != 0).astype(jnp.bfloat16)        # dj == 0 tap (offset -1)
    right_ok = (col != w - 1).astype(jnp.bfloat16)   # dj == 2 tap (offset +1)

    # ---- build the stacked, pre-masked conv tap slab: (9C, HW) bf16 ---------
    # slab[k*C + i, p] = x_padH_flat[i, p + di*w + dj] * mask_dj[p], k = di*3+dj
    for di in range(3):
        for dj in range(3):
            k = di * 3 + dj
            start = di * w + dj                       # static lane offset
            tap = xg_ref[:, start:start + hw]         # (C, HW) bf16
            if dj == 0:
                tap = tap * left_ok
            elif dj == 2:
                tap = tap * right_ok
            slab_ref[k * c:(k + 1) * c, :] = tap

    # ---- 3x3 conv (padding=1): ONE (C,9C)@(9C,HW) bf16 matmul, f32 acc ------
    y = jnp.dot(wk_ref[...], slab_ref[...],
                preferred_element_type=jnp.float32) + bconv_ref[...]   # (C, HW)
    y_ref[...] = y
    yb_ref[...] = y.astype(jnp.bfloat16)

    # ---- ChannelBlock (mode='No-residual'): pool -> FC -> relu -> FC -> sigmoid
    pooled = jnp.mean(y, axis=1, keepdims=True)                        # (C, 1)
    h1 = jnp.maximum(
        jnp.dot(w1_ref[...], pooled, preferred_element_type=jnp.float32)
        + b1_ref[...], 0.0)                                            # (C/16, 1)
    gate = jax.nn.sigmoid(
        jnp.dot(w2_ref[...], h1, preferred_element_type=jnp.float32)
        + b2_ref[...])                                                 # (C, 1)
    a_ref[...] = (y * gate).astype(jnp.bfloat16)                       # (C, HW)

    # ---- gram -> softmax(torch dim=1) -> attention, streamed column blocks --
    # For each TQ-wide block of gram columns (softmax is over the row axis, so
    # each column block is fully independent — no online rescale needed):
    #   g      = y^T @ y[:, cols]                  (HW, TQ)  bf16 MXU, f32 acc
    #   e      = exp(g - colmax)                   (HW, TQ)  -> bf16
    #   out    = (a @ e) * 1/colsum + y[:, cols]   (C,  TQ)  deferred divide
    @pl.loop(0, hw // tq)
    def _(j):
        q0 = pl.multiple_of(j * tq, tq)
        ycols = yb_ref[:, pl.ds(q0, tq)]                               # (C, TQ)
        g = lax.dot_general(yb_ref[...], ycols, (((0,), (0,)), ((), ())),
                            preferred_element_type=jnp.float32)        # (HW, TQ)
        m = jnp.max(g, axis=0, keepdims=True)                          # (1, TQ)
        e = jnp.exp(g - m).astype(jnp.bfloat16)                        # (HW, TQ)
        # denominator summed from the SAME bf16 weights used in the matmul
        colsum = jnp.sum(e.astype(jnp.float32), axis=0, keepdims=True)
        attn = jnp.dot(a_ref[...], e, preferred_element_type=jnp.float32)
        out_ref[:, pl.ds(q0, tq)] = (
            attn * pl.reciprocal(colsum, approx=True)
            + y_ref[:, pl.ds(q0, tq)]).astype(out_ref.dtype)


def pcblock1_forward(x, params):
    """x: (B, C, H, W) float32, NCHW (PyTorch convention)."""
    b, c, h, w = x.shape
    hw = h * w
    c16 = params["w1"].shape[0]
    tq = 128 if hw % 128 == 0 else hw      # column-block width for the gram chain

    # Host glue (no data blow-up): pad one zero ROW top/bottom, flatten rows,
    # add one guard element per end so all 9 conv taps are in-bounds slices.
    xp = jnp.pad(x, ((0, 0), (0, 0), (1, 1), (0, 0)))
    xg = jnp.pad(xp.reshape(b, c, (h + 2) * w), ((0, 0), (0, 0), (1, 1)))
    xg = xg.astype(jnp.bfloat16)
    L = (h + 2) * w + 2

    # Conv weight -> (C_out, 9*C_in); column k*C + i <-> tap k = di*3+dj, ch i.
    wk = jnp.transpose(params["wconv"], (0, 2, 3, 1)).reshape(c, 9 * c)
    wk = wk.astype(jnp.bfloat16)
    bconv = params["bconv"].reshape(c, 1).astype(jnp.float32)
    b1 = params["b1"].reshape(c16, 1).astype(jnp.float32)
    b2 = params["b2"].reshape(c, 1).astype(jnp.float32)

    kernel = functools.partial(_pcblock1_kernel, c=c, h=h, w=w, tq=tq)

    out = pl.pallas_call(
        kernel,
        out_shape=jax.ShapeDtypeStruct((b, c, hw), jnp.float32),
        grid_spec=pltpu.PrefetchScalarGridSpec(
            num_scalar_prefetch=0,
            grid=(b,),                                           # one image/step
            in_specs=[
                pl.BlockSpec((None, c, L), lambda i: (i, 0, 0)),  # padded input
                pl.BlockSpec((c, 9 * c), lambda i: (0, 0)),       # stacked conv W
                pl.BlockSpec((c, 1), lambda i: (0, 0)),           # conv bias
                pl.BlockSpec((c16, c), lambda i: (0, 0)),         # linear1 W
                pl.BlockSpec((c16, 1), lambda i: (0, 0)),         # linear1 b
                pl.BlockSpec((c, c16), lambda i: (0, 0)),         # linear2 W
                pl.BlockSpec((c, 1), lambda i: (0, 0)),           # linear2 b
            ],
            out_specs=pl.BlockSpec((None, c, hw), lambda i: (i, 0, 0)),
            scratch_shapes=[
                pltpu.VMEM((9 * c, hw), jnp.bfloat16),   # stacked conv tap slab
                pltpu.VMEM((c, hw), jnp.float32),        # y (f32, residual path)
                pltpu.VMEM((c, hw), jnp.bfloat16),       # y bf16 (gram operand)
                pltpu.VMEM((c, hw), jnp.bfloat16),       # a = y * gate (bf16)
            ],
        ),
        compiler_params=pltpu.CompilerParams(
            dimension_semantics=("parallel",),    # batch axis -> both TCs on v7x
            vmem_limit_bytes=32 * 1024 * 1024,    # conservative (v7x: 64 MiB/TC)
        ),
    )(xg, wk, bconv, params["w1"].astype(jnp.float32), b1,
      params["w2"].astype(jnp.float32), b2)

    return out.reshape(b, c, h, w)


def init_params(c, key):
    """Deterministic synthetic parameters matching the PyTorch module shapes."""
    c16 = c // 16
    k = jax.random.split(key, 6)

    def u(kk, shape, fan_in):
        bound = 1.0 / jnp.sqrt(jnp.float32(fan_in))
        return jax.random.uniform(kk, shape, jnp.float32, -bound, bound)

    return dict(
        wconv=u(k[0], (c, c, 3, 3), c * 9),   # Conv2d(C, C, 3, padding=1)
        bconv=u(k[1], (c,), c * 9),
        w1=u(k[2], (c16, c), c),              # Linear(C, C//16)
        b1=u(k[3], (c16,), c),
        w2=u(k[4], (c, c16), c16),            # Linear(C//16, C)
        b2=u(k[5], (c,), c16),
    )


def reference(x, p):
    """Plain-JAX f32 reference reproducing PCblock1.forward (sanity check)."""
    y = lax.conv_general_dilated(
        x, p["wconv"], (1, 1), "SAME",
        dimension_numbers=("NCHW", "OIHW", "NCHW"),
        precision=lax.Precision.HIGHEST) + p["bconv"][None, :, None, None]
    b, c, h, w = y.shape
    hw = h * w
    y_flat = y.reshape(b, c, hw)
    gram = jnp.einsum("bcp,bcq->bpq", y_flat, y_flat,
                      precision=lax.Precision.HIGHEST)           # (B, HW, HW)
    sm = jax.nn.softmax(gram, axis=1)                            # torch dim=1
    pooled = jnp.mean(y, axis=(2, 3))                            # (B, C)
    h1 = jax.nn.relu(pooled @ p["w1"].T + p["b1"])
    gate = jax.nn.sigmoid(h1 @ p["w2"].T + p["b2"])              # (B, C)
    att = y_flat * gate[:, :, None]                              # (B, C, HW)
    out = jnp.einsum("bck,bkq->bcq", att, sm,
                     precision=lax.Precision.HIGHEST)
    return out.reshape(b, c, h, w) + y                           # mode='residual'


if __name__ == "__main__":
    key = jax.random.PRNGKey(0)
    kx, kp = jax.random.split(key)

    # channel_num must be >= 16 (Linear(C, C//16)); H=W=16 -> HW=256 (lane-dense)
    B, C, H, W = 2, 32, 16, 16
    x = jax.random.normal(kx, (B, C, H, W), jnp.float32)
    params = init_params(C, kp)

    out = pcblock1_forward(x, params)
    out = jax.block_until_ready(out)

    ref = reference(x, params)
    max_err = float(jnp.max(jnp.abs(out - ref)))
    scale = float(jnp.max(jnp.abs(ref)))
    assert out.shape == (B, C, H, W)
    # bf16 MXU operands (conv / gram / attention) + approx reciprocal ->
    # compare with a relative bound; formula errors would be O(1) relative.
    assert max_err <= 5e-2 * scale, f"mismatch vs reference: {max_err} (scale {scale})"
    print("KERNEL_OK")
</pallas_src>

<mosaic_0001>
module attributes {stable_mosaic.version = 11 : i64} {
  func.func @_pcblock1_kernel(%arg0: i32, %arg1: memref<1x32x290xbf16, #tpu.memory_space<vmem>>, %arg2: memref<32x288xbf16, #tpu.memory_space<vmem>>, %arg3: memref<32x1xf32, #tpu.memory_space<vmem>>, %arg4: memref<2x32xf32, #tpu.memory_space<vmem>>, %arg5: memref<2x1xf32, #tpu.memory_space<vmem>>, %arg6: memref<32x2xf32, #tpu.memory_space<vmem>>, %arg7: memref<32x1xf32, #tpu.memory_space<vmem>>, %arg8: memref<1x32x256xf32, #tpu.memory_space<vmem>>, %arg9: memref<288x256xbf16, #tpu.memory_space<vmem>>, %arg10: memref<32x256xf32, #tpu.memory_space<vmem>>, %arg11: memref<32x256xbf16, #tpu.memory_space<vmem>>, %arg12: memref<32x256xbf16, #tpu.memory_space<vmem>>) attributes {dimension_semantics = [#tpu.dimension_semantics<parallel>], iteration_bounds = array<i64: 2>, scalar_prefetch = 0 : i64, scratch_operands = 4 : i64, tpu.core_type = #tpu.core_type<tc>, window_params = [{transform_indices = @transform_0, window_bounds = array<i64: 1, 32, 290>}, {pipeline_mode = #tpu.pipeline_mode<synchronous>, transform_indices = @transform_1, window_bounds = array<i64: 32, 288>}, {pipeline_mode = #tpu.pipeline_mode<synchronous>, transform_indices = @transform_2, window_bounds = array<i64: 32, 1>}, {pipeline_mode = #tpu.pipeline_mode<synchronous>, transform_indices = @transform_3, window_bounds = array<i64: 2, 32>}, {pipeline_mode = #tpu.pipeline_mode<synchronous>, transform_indices = @transform_4, window_bounds = array<i64: 2, 1>}, {pipeline_mode = #tpu.pipeline_mode<synchronous>, transform_indices = @transform_5, window_bounds = array<i64: 32, 2>}, {pipeline_mode = #tpu.pipeline_mode<synchronous>, transform_indices = @transform_6, window_bounds = array<i64: 32, 1>}, {transform_indices = @transform_7, window_bounds = array<i64: 1, 32, 256>}]} {
    %0 = tpu.iota {dimensions = array<i32: 1>} : vector<1x256xi32>
    %c16_i32 = arith.constant 16 : i32
    %c0_i32 = arith.constant 0 : i32
    %1 = arith.cmpi eq, %c16_i32, %c0_i32 : i32
    %c1_i32 = arith.constant 1 : i32
    %2 = arith.select %1, %c1_i32, %c16_i32 : i32
    %3 = vector.broadcast %2 : i32 to vector<1x256xi32>
    %4 = arith.remsi %0, %3 : vector<1x256xi32>
    %c0_i32_0 = arith.constant 0 : i32
    %5 = vector.broadcast %c0_i32_0 : i32 to vector<1x256xi32>
    %6 = arith.cmpi ne, %4, %5 : vector<1x256xi32>
    %c0_i32_1 = arith.constant 0 : i32
    %7 = vector.broadcast %c0_i32_1 : i32 to vector<1x256xi32>
    %8 = arith.cmpi slt, %4, %7 : vector<1x256xi32>
    %c0_i32_2 = arith.constant 0 : i32
    %9 = arith.cmpi slt, %2, %c0_i32_2 : i32
    %10 = vector.broadcast %9 : i1 to vector<1x256xi1>
    %11 = vector.broadcast %10 : vector<1x256xi1> to vector<1x256xi1>
    %12 = arith.xori %8, %11 : vector<1x256xi1>
    %13 = arith.andi %12, %6 : vector<1x256xi1>
    %14 = vector.broadcast %2 : i32 to vector<1x256xi32>
    %15 = arith.addi %4, %14 : vector<1x256xi32>
    %16 = arith.select %13, %15, %4 : vector<1x256xi1>, vector<1x256xi32>
    %c0_i32_3 = arith.constant 0 : i32
    %17 = vector.broadcast %c0_i32_3 : i32 to vector<1x256xi32>
    %18 = arith.cmpi ne, %16, %17 : vector<1x256xi32>
    %19 = arith.extui %18 : vector<1x256xi1> to vector<1x256xi32>
    %20 = arith.sitofp %19 : vector<1x256xi32> to vector<1x256xf32>
    %21 = arith.truncf %20 : vector<1x256xf32> to vector<1x256xbf16>
    %c15_i32 = arith.constant 15 : i32
    %22 = vector.broadcast %c15_i32 : i32 to vector<1x256xi32>
    %23 = arith.cmpi ne, %16, %22 : vector<1x256xi32>
    %24 = arith.extui %23 : vector<1x256xi1> to vector<1x256xi32>
    %25 = arith.sitofp %24 : vector<1x256xi32> to vector<1x256xf32>
    %26 = arith.truncf %25 : vector<1x256xf32> to vector<1x256xbf16>
    %c0 = arith.constant 0 : index
    %c0_4 = arith.constant 0 : index
    %c0_5 = arith.constant 0 : index
    %27 = vector.load %arg1[%c0, %c0_4, %c0_5] : memref<1x32x290xbf16, #tpu.memory_space<vmem>>, vector<1x32x256xbf16>
    %28 = vector.shape_cast %27 : vector<1x32x256xbf16> to vector<32x256xbf16>
    %29 = vector.broadcast %21 : vector<1x256xbf16> to vector<32x256xbf16>
    %30 = arith.mulf %28, %29 : vector<32x256xbf16>
    %c0_6 = arith.constant 0 : index
    %c0_7 = arith.constant 0 : index
    %31 = vector.load %arg9[%c0_6, %c0_7] : memref<288x256xbf16, #tpu.memory_space<vmem>>, vector<32x256xbf16>
    tpu.vector_store %arg9[%c0_6, %c0_7], %30 {strides = array<i32>} : memref<288x256xbf16, #tpu.memory_space<vmem>>, vector<32x256xbf16>,
    %c0_8 = arith.constant 0 : index
    %c0_9 = arith.constant 0 : index
    %c1 = arith.constant 1 : index
    %32 = vector.load %arg1[%c0_8, %c0_9, %c1] : memref<1x32x290xbf16, #tpu.memory_space<vmem>>, vector<1x32x256xbf16>
    %33 = vector.shape_cast %32 : vector<1x32x256xbf16> to vector<32x256xbf16>
    %c32 = arith.constant 32 : index
    %c0_10 = arith.constant 0 : index
    %34 = vector.load %arg9[%c32, %c0_10] : memref<288x256xbf16, #tpu.memory_space<vmem>>, vector<32x256xbf16>
    tpu.vector_store %arg9[%c32, %c0_10], %33 {strides = array<i32>} : memref<288x256xbf16, #tpu.memory_space<vmem>>, vector<32x256xbf16>,
    %c0_11 = arith.constant 0 : index
    %c0_12 = arith.constant 0 : index
    %c2 = arith.constant 2 : index
    %35 = vector.load %arg1[%c0_11, %c0_12, %c2] : memref<1x32x290xbf16, #tpu.memory_space<vmem>>, vector<1x32x256xbf16>
    %36 = vector.shape_cast %35 : vector<1x32x256xbf16> to vector<32x256xbf16>
    %37 = vector.broadcast %26 : vector<1x256xbf16> to vector<32x256xbf16>
    %38 = arith.mulf %36, %37 : vector<32x256xbf16>
    %c64 = arith.constant 64 : index
    %c0_13 = arith.constant 0 : index
    %39 = vector.load %arg9[%c64, %c0_13] : memref<288x256xbf16, #tpu.memory_space<vmem>>, vector<32x256xbf16>
    tpu.vector_store %arg9[%c64, %c0_13], %38 {strides = array<i32>} : memref<288x256xbf16, #tpu.memory_space<vmem>>, vector<32x256xbf16>,
    %c0_14 = arith.constant 0 : index
    %c0_15 = arith.constant 0 : index
    %c16 = arith.constant 16 : index
    %40 = vector.load %arg1[%c0_14, %c0_15, %c16] : memref<1x32x290xbf16, #tpu.memory_space<vmem>>, vector<1x32x256xbf16>
    %41 = vector.shape_cast %40 : vector<1x32x256xbf16> to vector<32x256xbf16>
    %42 = vector.broadcast %21 : vector<1x256xbf16> to vector<32x256xbf16>
    %43 = arith.mulf %41, %42 : vector<32x256xbf16>
    %c96 = arith.constant 96 : index
    %c0_16 = arith.constant 0 : index
    %44 = vector.load %arg9[%c96, %c0_16] : memref<288x256xbf16, #tpu.memory_space<vmem>>, vector<32x256xbf16>
    tpu.vector_store %arg9[%c96, %c0_16], %43 {strides = array<i32>} : memref<288x256xbf16, #tpu.memory_space<vmem>>, vector<32x256xbf16>,
    %c0_17 = arith.constant 0 : index
    %c0_18 = arith.constant 0 : index
    %c17 = arith.constant 17 : index
    %45 = vector.load %arg1[%c0_17, %c0_18, %c17] : memref<1x32x290xbf16, #tpu.memory_space<vmem>>, vector<1x32x256xbf16>
    %46 = vector.shape_cast %45 : vector<1x32x256xbf16> to vector<32x256xbf16>
    %c128 = arith.constant 128 : index
    %c0_19 = arith.constant 0 : index
    %47 = vector.load %arg9[%c128, %c0_19] : memref<288x256xbf16, #tpu.memory_space<vmem>>, vector<32x256xbf16>
    tpu.vector_store %arg9[%c128, %c0_19], %46 {strides = array<i32>} : memref<288x256xbf16, #tpu.memory_space<vmem>>, vector<32x256xbf16>,
    %c0_20 = arith.constant 0 : index
    %c0_21 = arith.constant 0 : index
    %c18 = arith.constant 18 : index
    %48 = vector.load %arg1[%c0_20, %c0_21, %c18] : memref<1x32x290xbf16, #tpu.memory_space<vmem>>, vector<1x32x256xbf16>
    %49 = vector.shape_cast %48 : vector<1x32x256xbf16> to vector<32x256xbf16>
    %50 = vector.broadcast %26 : vector<1x256xbf16> to vector<32x256xbf16>
    %51 = arith.mulf %49, %50 : vector<32x256xbf16>
    %c160 = arith.constant 160 : index
    %c0_22 = arith.constant 0 : index
    %52 = vector.load %arg9[%c160, %c0_22] : memref<288x256xbf16, #tpu.memory_space<vmem>>, vector<32x256xbf16>
    tpu.vector_store %arg9[%c160, %c0_22], %51 {strides = array<i32>} : memref<288x256xbf16, #tpu.memory_space<vmem>>, vector<32x256xbf16>,
    %c0_23 = arith.constant 0 : index
    %c0_24 = arith.constant 0 : index
    %c32_25 = arith.constant 32 : index
    %53 = vector.load %arg1[%c0_23, %c0_24, %c32_25] : memref<1x32x290xbf16, #tpu.memory_space<vmem>>, vector<1x32x256xbf16>
    %54 = vector.shape_cast %53 : vector<1x32x256xbf16> to vector<32x256xbf16>
    %55 = vector.broadcast %21 : vector<1x256xbf16> to vector<32x256xbf16>
    %56 = arith.mulf %54, %55 : vector<32x256xbf16>
    %c192 = arith.constant 192 : index
    %c0_26 = arith.constant 0 : index
    %57 = vector.load %arg9[%c192, %c0_26] : memref<288x256xbf16, #tpu.memory_space<vmem>>, vector<32x256xbf16>
    tpu.vector_store %arg9[%c192, %c0_26], %56 {strides = array<i32>} : memref<288x256xbf16, #tpu.memory_space<vmem>>, vector<32x256xbf16>,
    %c0_27 = arith.constant 0 : index
    %c0_28 = arith.constant 0 : index
    %c33 = arith.constant 33 : index
    %58 = vector.load %arg1[%c0_27, %c0_28, %c33] : memref<1x32x290xbf16, #tpu.memory_space<vmem>>, vector<1x32x256xbf16>
    %59 = vector.shape_cast %58 : vector<1x32x256xbf16> to vector<32x256xbf16>
    %c224 = arith.constant 224 : index
    %c0_29 = arith.constant 0 : index
    %60 = vector.load %arg9[%c224, %c0_29] : memref<288x256xbf16, #tpu.memory_space<vmem>>, vector<32x256xbf16>
    tpu.vector_store %arg9[%c224, %c0_29], %59 {strides = array<i32>} : memref<288x256xbf16, #tpu.memory_space<vmem>>, vector<32x256xbf16>,
    %c0_30 = arith.constant 0 : index
    %c0_31 = arith.constant 0 : index
    %c34 = arith.constant 34 : index
    %61 = vector.load %arg1[%c0_30, %c0_31, %c34] : memref<1x32x290xbf16, #tpu.memory_space<vmem>>, vector<1x32x256xbf16>
    %62 = vector.shape_cast %61 : vector<1x32x256xbf16> to vector<32x256xbf16>
    %63 = vector.broadcast %26 : vector<1x256xbf16> to vector<32x256xbf16>
    %64 = arith.mulf %62, %63 : vector<32x256xbf16>
    %c256 = arith.constant 256 : index
    %c0_32 = arith.constant 0 : index
    %65 = vector.load %arg9[%c256, %c0_32] : memref<288x256xbf16, #tpu.memory_space<vmem>>, vector<32x256xbf16>
    tpu.vector_store %arg9[%c256, %c0_32], %64 {strides = array<i32>} : memref<288x256xbf16, #tpu.memory_space<vmem>>, vector<32x256xbf16>,
    %c0_33 = arith.constant 0 : index
    %c0_34 = arith.constant 0 : index
    %66 = vector.load %arg2[%c0_33, %c0_34] : memref<32x288xbf16, #tpu.memory_space<vmem>>, vector<32x288xbf16>
    %c0_35 = arith.constant 0 : index
    %c0_36 = arith.constant 0 : index
    %67 = vector.load %arg9[%c0_35, %c0_36] : memref<288x256xbf16, #tpu.memory_space<vmem>>, vector<288x256xbf16>
    %cst = arith.constant dense<0.000000e+00> : vector<32x256xf32>
    %68 = tpu.matmul %66, %67, %cst {dimension_numbers = #tpu.dot_dimension_numbers<[1], [0], [0], [1], [0, 0, 1, 1], [], []>} : vector<32x288xbf16>, vector<288x256xbf16>, vector<32x256xf32> -> vector<32x256xf32>
    %c0_37 = arith.constant 0 : index
    %c0_38 = arith.constant 0 : index
    %69 = vector.load %arg3[%c0_37, %c0_38] : memref<32x1xf32, #tpu.memory_space<vmem>>, vector<32x1xf32>
    %70 = vector.broadcast %69 : vector<32x1xf32> to vector<32x256xf32>
    %71 = arith.addf %68, %70 : vector<32x256xf32>
    %c0_39 = arith.constant 0 : index
    %c0_40 = arith.constant 0 : index
    %72 = vector.load %arg10[%c0_39, %c0_40] : memref<32x256xf32, #tpu.memory_space<vmem>>, vector<32x256xf32>
    tpu.vector_store %arg10[%c0_39, %c0_40], %71 {strides = array<i32>} : memref<32x256xf32, #tpu.memory_space<vmem>>, vector<32x256xf32>,
    %73 = arith.truncf %71 : vector<32x256xf32> to vector<32x256xbf16>
    %c0_41 = arith.constant 0 : index
    %c0_42 = arith.constant 0 : index
    %74 = vector.load %arg11[%c0_41, %c0_42] : memref<32x256xbf16, #tpu.memory_space<vmem>>, vector<32x256xbf16>
    tpu.vector_store %arg11[%c0_41, %c0_42], %73 {strides = array<i32>} : memref<32x256xbf16, #tpu.memory_space<vmem>>, vector<32x256xbf16>,
    %cst_43 = arith.constant dense<0.000000e+00> : vector<32xf32>
    %75 = vector.multi_reduction <add>, %71, %cst_43 [1] : vector<32x256xf32> to vector<32xf32>
    %76 = vector.shape_cast %75 : vector<32xf32> to vector<32x1xf32>
    %cst_44 = arith.constant 2.560000e+02 : f32
    %77 = vector.broadcast %cst_44 : f32 to vector<32x1xf32>
    %78 = arith.divf %76, %77 : vector<32x1xf32>
    %c0_45 = arith.constant 0 : index
    %c0_46 = arith.constant 0 : index
    %79 = vector.load %arg4[%c0_45, %c0_46] : memref<2x32xf32, #tpu.memory_space<vmem>>, vector<2x32xf32>
    %cst_47 = arith.constant dense<0.000000e+00> : vector<2x1xf32>
    %80 = tpu.matmul %79, %78, %cst_47 {dimension_numbers = #tpu.dot_dimension_numbers<[1], [0], [0], [1], [0, 0, 1, 1], [], []>} : vector<2x32xf32>, vector<32x1xf32>, vector<2x1xf32> -> vector<2x1xf32>
    %c0_48 = arith.constant 0 : index
    %c0_49 = arith.constant 0 : index
    %81 = vector.load %arg5[%c0_48, %c0_49] : memref<2x1xf32, #tpu.memory_space<vmem>>, vector<2x1xf32>
    %82 = arith.addf %80, %81 : vector<2x1xf32>
    %cst_50 = arith.constant 0.000000e+00 : f32
    %83 = vector.broadcast %cst_50 : f32 to vector<2x1xf32>
    %84 = arith.maximumf %82, %83 : vector<2x1xf32>
    %c0_51 = arith.constant 0 : index
    %c0_52 = arith.constant 0 : index
    %85 = vector.load %arg6[%c0_51, %c0_52] : memref<32x2xf32, #tpu.memory_space<vmem>>, vector<32x2xf32>
    %cst_53 = arith.constant dense<0.000000e+00> : vector<32x1xf32>
    %86 = tpu.matmul %85, %84, %cst_53 {dimension_numbers = #tpu.dot_dimension_numbers<[1], [0], [0], [1], [0, 0, 1, 1], [], []>} : vector<32x2xf32>, vector<2x1xf32>, vector<32x1xf32> -> vector<32x1xf32>
    %c0_54 = arith.constant 0 : index
    %c0_55 = arith.constant 0 : index
    %87 = vector.load %arg7[%c0_54, %c0_55] : memref<32x1xf32, #tpu.memory_space<vmem>>, vector<32x1xf32>
    %88 = arith.addf %86, %87 : vector<32x1xf32>
    %89 = arith.negf %88 : vector<32x1xf32>
    %90 = math.exp %89 : vector<32x1xf32>
    %cst_56 = arith.constant 1.000000e+00 : f32
    %91 = vector.broadcast %cst_56 : f32 to vector<32x1xf32>
    %92 = arith.addf %91, %90 : vector<32x1xf32>
    %93 = arith.divf %91, %92 : vector<32x1xf32>
    %94 = vector.broadcast %93 : vector<32x1xf32> to vector<32x256xf32>
    %95 = arith.mulf %71, %94 : vector<32x256xf32>
    %96 = arith.truncf %95 : vector<32x256xf32> to vector<32x256xbf16>
    %c0_57 = arith.constant 0 : index
    %c0_58 = arith.constant 0 : index
    %97 = vector.load %arg12[%c0_57, %c0_58] : memref<32x256xbf16, #tpu.memory_space<vmem>>, vector<32x256xbf16>
    tpu.vector_store %arg12[%c0_57, %c0_58], %96 {strides = array<i32>} : memref<32x256xbf16, #tpu.memory_space<vmem>>, vector<32x256xbf16>,
    %c0_i32_59 = arith.constant 0 : i32
    %c2_i32 = arith.constant 2 : i32
    %98 = arith.addi %c0_i32_59, %c2_i32 : i32
    %c1_i32_60 = arith.constant 1 : i32
    scf.for %arg13 = %c0_i32_59 to %98 step %c1_i32_60  : i32 {
      %c1_i32_62 = arith.constant 1 : i32
      %99 = arith.muli %arg13, %c1_i32_62 : i32
      %c0_i32_63 = arith.constant 0 : i32
      %100 = arith.addi %c0_i32_63, %99 : i32
      %c128_i32 = arith.constant 128 : i32
      %101 = arith.muli %100, %c128_i32 : i32
      %102 = tpu.assume_multiple %101, 128 : i32
      %c0_64 = arith.constant 0 : index
      %103 = arith.index_cast %102 : i32 to index
      %104 = vector.load %arg11[%c0_64, %103] : memref<32x256xbf16, #tpu.memory_space<vmem>>, vector<32x128xbf16>
      %c0_65 = arith.constant 0 : index
      %c0_66 = arith.constant 0 : index
      %105 = vector.load %arg11[%c0_65, %c0_66] : memref<32x256xbf16, #tpu.memory_space<vmem>>, vector<32x256xbf16>
      %cst_67 = arith.constant dense<0.000000e+00> : vector<256x128xf32>
      %106 = tpu.matmul %105, %104, %cst_67 {dimension_numbers = #tpu.dot_dimension_numbers<[0], [0], [1], [1], [0, 1, 1, 1], [], []>} : vector<32x256xbf16>, vector<32x128xbf16>, vector<256x128xf32> -> vector<256x128xf32>
      %cst_68 = arith.constant dense<0xFF800000> : vector<128xf32>
      %107 = vector.multi_reduction <maximumf>, %106, %cst_68 [0] : vector<256x128xf32> to vector<128xf32>
      %108 = vector.shape_cast %107 : vector<128xf32> to vector<1x128xf32>
      %109 = vector.broadcast %108 : vector<1x128xf32> to vector<256x128xf32>
      %110 = arith.subf %106, %109 : vector<256x128xf32>
      %111 = math.exp %110 : vector<256x128xf32>
      %112 = arith.truncf %111 : vector<256x128xf32> to vector<256x128xbf16>
      %113 = arith.extf %112 : vector<256x128xbf16> to vector<256x128xf32>
      %cst_69 = arith.constant dense<0.000000e+00> : vector<128xf32>
      %114 = vector.multi_reduction <add>, %113, %cst_69 [0] : vector<256x128xf32> to vector<128xf32>
      %115 = vector.shape_cast %114 : vector<128xf32> to vector<1x128xf32>
      %c0_70 = arith.constant 0 : index
      %c0_71 = arith.constant 0 : index
      %116 = vector.load %arg12[%c0_70, %c0_71] : memref<32x256xbf16, #tpu.memory_space<vmem>>, vector<32x256xbf16>
      %cst_72 = arith.constant dense<0.000000e+00> : vector<32x128xf32>
      %117 = tpu.matmul %116, %112, %cst_72 {dimension_numbers = #tpu.dot_dimension_numbers<[1], [0], [0], [1], [0, 0, 1, 1], [], []>} : vector<32x256xbf16>, vector<256x128xbf16>, vector<32x128xf32> -> vector<32x128xf32>
      %118 = tpu.reciprocal %115 {approx = true} : vector<1x128xf32> -> vector<1x128xf32>
      %119 = vector.broadcast %118 : vector<1x128xf32> to vector<32x128xf32>
      %120 = arith.mulf %117, %119 : vector<32x128xf32>
      %c0_73 = arith.constant 0 : index
      %121 = arith.index_cast %102 : i32 to index
      %122 = vector.load %arg10[%c0_73, %121] : memref<32x256xf32, #tpu.memory_space<vmem>>, vector<32x128xf32>
      %123 = arith.addf %120, %122 : vector<32x128xf32>
      %c0_74 = arith.constant 0 : index
      %c0_75 = arith.constant 0 : index
      %124 = arith.index_cast %102 : i32 to index
      %125 = vector.load %arg8[%c0_74, %c0_75, %124] : memref<1x32x256xf32, #tpu.memory_space<vmem>>, vector<1x32x128xf32>
      %126 = vector.shape_cast %125 : vector<1x32x128xf32> to vector<32x128xf32>
      %127 = vector.shape_cast %123 : vector<32x128xf32> to vector<1x32x128xf32>
      tpu.vector_store %arg8[%c0_74, %c0_75, %124], %127 {strides = array<i32>} : memref<1x32x256xf32, #tpu.memory_space<vmem>>, vector<1x32x128xf32>,
    }
    %c2_i32_61 = arith.constant 2 : i32
    return
  }
  func.func @transform_0(%arg0: i32) -> (i32, i32, i32) {
    %c0_i32 = arith.constant 0 : i32
    %c0_i32_0 = arith.constant 0 : i32
    %c0_i32_1 = arith.constant 0 : i32
    return %arg0, %c0_i32, %c0_i32_0 : i32, i32, i32
  }
  func.func @transform_1(%arg0: i32) -> (i32, i32) {
    %c0_i32 = arith.constant 0 : i32
    %c0_i32_0 = arith.constant 0 : i32
    %c0_i32_1 = arith.constant 0 : i32
    return %c0_i32, %c0_i32_0 : i32, i32
  }
  func.func @transform_2(%arg0: i32) -> (i32, i32) {
    %c0_i32 = arith.constant 0 : i32
    %c0_i32_0 = arith.constant 0 : i32
    %c0_i32_1 = arith.constant 0 : i32
    return %c0_i32, %c0_i32_0 : i32, i32
  }
  func.func @transform_3(%arg0: i32) -> (i32, i32) {
    %c0_i32 = arith.constant 0 : i32
    %c0_i32_0 = arith.constant 0 : i32
    %c0_i32_1 = arith.constant 0 : i32
    return %c0_i32, %c0_i32_0 : i32, i32
  }
  func.func @transform_4(%arg0: i32) -> (i32, i32) {
    %c0_i32 = arith.constant 0 : i32
    %c0_i32_0 = arith.constant 0 : i32
    %c0_i32_1 = arith.constant 0 : i32
    return %c0_i32, %c0_i32_0 : i32, i32
  }
  func.func @transform_5(%arg0: i32) -> (i32, i32) {
    %c0_i32 = arith.constant 0 : i32
    %c0_i32_0 = arith.constant 0 : i32
    %c0_i32_1 = arith.constant 0 : i32
    return %c0_i32, %c0_i32_0 : i32, i32
  }
  func.func @transform_6(%arg0: i32) -> (i32, i32) {
    %c0_i32 = arith.constant 0 : i32
    %c0_i32_0 = arith.constant 0 : i32
    %c0_i32_1 = arith.constant 0 : i32
    return %c0_i32, %c0_i32_0 : i32, i32
  }
  func.func @transform_7(%arg0: i32) -> (i32, i32, i32) {
    %c0_i32 = arith.constant 0 : i32
    %c0_i32_0 = arith.constant 0 : i32
    %c0_i32_1 = arith.constant 0 : i32
    return %arg0, %c0_i32, %c0_i32_0 : i32, i32, i32
  }
}

</mosaic_0001>

<llo_original>
// kernel: tpu_custom_call.1
$region0: #{tpu_custom_call.1}
  #allocation0 [shape = 'u32[]', space=smem, size = 0x4, offset = 0x4, fixed_abs, tag = 'smem constant byte address 0x4 - core index']
  #allocation1 [shape = 'u32[144,128]{1,0:T(1,128)}', space=vmem, size = 0x12000, scoped, tag = 'internal scratch']
  #allocation2 [shape = 'bf16[288,256]{1,0:T(8,128)(2,1)}', space=vmem, size = 0x24000, scoped, tag = 'scratch operand']
  #allocation3 [shape = 'f32[32,256]{1,0:T(8,128)}', space=vmem, size = 0x8000, scoped, tag = 'scratch operand']
  #allocation4 [shape = 'bf16[32,256]{1,0:T(8,128)(2,1)}', space=vmem, size = 0x4000, scoped, tag = 'scratch operand']
  #allocation5 [shape = 'bf16[32,256]{1,0:T(8,128)(2,1)}', space=vmem, size = 0x4000, scoped, tag = 'scratch operand']
  %s0 = inlined_call_operand.vmem [shape: bf16[2,32,290], index: 0, kind: input, shape index: {}]
  %s1 = inlined_call_operand.hbm [shape: bf16[32,288], index: 1, kind: input, shape index: {}]
  %s2 = inlined_call_operand.vmem [shape: f32[32,1], index: 2, kind: input, shape index: {}]
  %s3 = inlined_call_operand.vmem [shape: f32[2,32], index: 3, kind: input, shape index: {}]
  %s4 = inlined_call_operand.vmem [shape: f32[2,1], index: 4, kind: input, shape index: {}]
  %s5 = inlined_call_operand.vmem [shape: f32[32,2], index: 5, kind: input, shape index: {}]
  %s6 = inlined_call_operand.vmem [shape: f32[32,1], index: 6, kind: input, shape index: {}]
  %s7 = inlined_call_operand.hbm [shape: f32[2,32,256], index: 7, kind: output, shape index: {}]
  %s8 = sld [smem:[#allocation0]]
  $region72: #{tpu_custom_call.1} parent=0
    _
  %s10 = ssub.s32 1, %s8
  %s11 = scalar_select 0, %s10, %s8
  $region1: #{tpu_custom_call.1} parent=0
    #allocation6 [shape = 'u8[24576]{0}', space=vmem, size = 0x6000, scoped, tag = 'input window, operand 1, single buffered']
    #allocation7 [shape = 's32[2]{0}', space=sflag, size = 0x8, scoped, tag = 'scoped memory for tpu_custom_call.1']
    #allocation8 [shape = 's32[2]{0}', space=sflag, size = 0x8, scoped, tag = 'scoped memory for tpu_custom_call.1']
    #allocation9 [shape = 'u8[65536]{0}', space=vmem, size = 0x10000, scoped, tag = 'output window, operand 0']
    %12 = vsyncpa [#allocation7], 0
    %13 = vsyncpa [#allocation8], 0
    %s14 = scalar_lea.sflag [#allocation8], 1
    %15 = vsyncpa %s14, 0
    loop: start=0, step=1, limit=4
    $region2: #{tpu_custom_call.1} parent=1 // loop_pre_header
      _
    $region3: #{tpu_custom_call.1} parent=1 // loop_header
      %s17 = sphi 0, %s21
      %p18 = scmp.ge.s32.totalorder %s17, 4
      %s27 = sphi 0, %s29
      %s30 = sphi 0, %s27
      %s31 = sphi 0, %s30
      %s47 = sphi 0, %s31
      %s51 = sphi 0, %s51
      %s53 = sphi 0, %s51
      %s54 = sphi 0, %s53
      %s68 = sphi 0, %s54
      %s72 = sphi 0, %s72
      %s74 = sphi 0, %s72
      %s75 = sphi 0, %s74
      %s89 = sphi 0, %s75
      %s93 = sphi 0, %s93
      %s95 = sphi 0, %s93
      %s96 = sphi 0, %s95
      %s110 = sphi 0, %s96
      %s114 = sphi 0, %s114
      %s116 = sphi 0, %s114
      %s117 = sphi 0, %s116
      %s131 = sphi 0, %s117
      %s135 = sphi 0, %s135
      %s137 = sphi 0, %s135
      %s138 = sphi 0, %s137
      %s152 = sphi 0, %s138
      %s156 = sphi 0, %s156
      %s158 = sphi 0, %s156
      %s159 = sphi 0, %s158
      %s173 = sphi 0, %s159
      %s179 = sphi 0, %s181
      %s182 = sphi 0, %s179
      %s183 = sphi 0, %s182
      %s199 = sphi 0, %s183
    $region4: #{tpu_custom_call.1} parent=1 // loop_header_branch
      %20 = sbr.rel (%p18) target = $region8
    $region5: #{tpu_custom_call.1} parent=1 // loop_body
      %s22 = ssub.s32 %s17, 1
      %s23 = ssub.s32 %s17, 2
      %s24 = sadd.s32 %s17, 1
      %s25 = ssub.s32 %s17, %s24
      %p26 = scmp.eq.s32.totalorder %s25, 0
      %s28 = sadd.s32 %s27, 1
      %s29 = scalar_select %p26, %s27, %s28
      %p32 = pneg %p26
      %p33 = scmp.eq.s32.totalorder %s17, 1
      %p34 = por %p32, %p33
      %p35 = scmp.ne.s32.totalorder %s27, %s30
      %p36 = scmp.eq.s32.totalorder %s17, 0
      %p37 = por %p35, %p36
      %p38 = scmp.ne.s32.totalorder %s27, %s30
      %p39 = scmp.eq.s32.totalorder %s22, 1
      %p40 = por %p38, %p39
      %p41 = scmp.ne.s32.totalorder %s30, %s31
      %p42 = scmp.eq.s32.totalorder %s22, 0
      %p43 = por %p41, %p42
      %p44 = scmp.ne.s32.totalorder %s30, %s31
      %p45 = scmp.eq.s32.totalorder %s23, 1
      %p46 = por %p44, %p45
      %p48 = scmp.ne.s32.totalorder %s31, %s47
      %p49 = scmp.eq.s32.totalorder %s23, 0
      %p50 = por %p48, %p49
      %s52 = sadd.s32 %s51, 1
      %p55 = scmp.eq.s32.totalorder %s17, 1
      %p56 = scmp.ne.s32.totalorder %s51, %s53
      %p57 = scmp.eq.s32.totalorder %s17, 0
      %p58 = por %p56, %p57
      %p59 = scmp.ne.s32.totalorder %s51, %s53
      %p60 = scmp.eq.s32.totalorder %s22, 1
      %p61 = por %p59, %p60
      %p62 = scmp.ne.s32.totalorder %s53, %s54
      %p63 = scmp.eq.s32.totalorder %s22, 0
      %p64 = por %p62, %p63
      %p65 = scmp.ne.s32.totalorder %s53, %s54
      %p66 = scmp.eq.s32.totalorder %s23, 1
      %p67 = por %p65, %p66
      %p69 = scmp.ne.s32.totalorder %s54, %s68
      %p70 = scmp.eq.s32.totalorder %s23, 0
      %p71 = por %p69, %p70
      %s73 = sadd.s32 %s72, 1
      %p76 = scmp.eq.s32.totalorder %s17, 1
      %p77 = scmp.ne.s32.totalorder %s72, %s74
      %p78 = scmp.eq.s32.totalorder %s17, 0
      %p79 = por %p77, %p78
      %p80 = scmp.ne.s32.totalorder %s72, %s74
      %p81 = scmp.eq.s32.totalorder %s22, 1
      %p82 = por %p80, %p81
      %p83 = scmp.ne.s32.totalorder %s74, %s75
      %p84 = scmp.eq.s32.totalorder %s22, 0
      %p85 = por %p83, %p84
      %p86 = scmp.ne.s32.totalorder %s74, %s75
      %p87 = scmp.eq.s32.totalorder %s23, 1
      %p88 = por %p86, %p87
      %p90 = scmp.ne.s32.totalorder %s75, %s89
      %p91 = scmp.eq.s32.totalorder %s23, 0
      %p92 = por %p90, %p91
      %s94 = sadd.s32 %s93, 1
      %p97 = scmp.eq.s32.totalorder %s17, 1
      %p98 = scmp.ne.s32.totalorder %s93, %s95
      %p99 = scmp.eq.s32.totalorder %s17, 0
      %p100 = por %p98, %p99
      %p101 = scmp.ne.s32.totalorder %s93, %s95
      %p102 = scmp.eq.s32.totalorder %s22, 1
      %p103 = por %p101, %p102
      %p104 = scmp.ne.s32.totalorder %s95, %s96
      %p105 = scmp.eq.s32.totalorder %s22, 0
      %p106 = por %p104, %p105
      %p107 = scmp.ne.s32.totalorder %s95, %s96
      %p108 = scmp.eq.s32.totalorder %s23, 1
      %p109 = por %p107, %p108
      %p111 = scmp.ne.s32.totalorder %s96, %s110
      %p112 = scmp.eq.s32.totalorder %s23, 0
      %p113 = por %p111, %p112
      %s115 = sadd.s32 %s114, 1
      %p118 = scmp.eq.s32.totalorder %s17, 1
      %p119 = scmp.ne.s32.totalorder %s114, %s116
      %p120 = scmp.eq.s32.totalorder %s17, 0
      %p121 = por %p119, %p120
      %p122 = scmp.ne.s32.totalorder %s114, %s116
      %p123 = scmp.eq.s32.totalorder %s22, 1
      %p124 = por %p122, %p123
      %p125 = scmp.ne.s32.totalorder %s116, %s117
      %p126 = scmp.eq.s32.totalorder %s22, 0
      %p127 = por %p125, %p126
      %p128 = scmp.ne.s32.totalorder %s116, %s117
      %p129 = scmp.eq.s32.totalorder %s23, 1
      %p130 = por %p128, %p129
      %p132 = scmp.ne.s32.totalorder %s117, %s131
      %p133 = scmp.eq.s32.totalorder %s23, 0
      %p134 = por %p132, %p133
      %s136 = sadd.s32 %s135, 1
      %p139 = scmp.eq.s32.totalorder %s17, 1
      %p140 = scmp.ne.s32.totalorder %s135, %s137
      %p141 = scmp.eq.s32.totalorder %s17, 0
      %p142 = por %p140, %p141
      %p143 = scmp.ne.s32.totalorder %s135, %s137
      %p144 = scmp.eq.s32.totalorder %s22, 1
      %p145 = por %p143, %p144
      %p146 = scmp.ne.s32.totalorder %s137, %s138
      %p147 = scmp.eq.s32.totalorder %s22, 0
      %p148 = por %p146, %p147
      %p149 = scmp.ne.s32.totalorder %s137, %s138
      %p150 = scmp.eq.s32.totalorder %s23, 1
      %p151 = por %p149, %p150
      %p153 = scmp.ne.s32.totalorder %s138, %s152
      %p154 = scmp.eq.s32.totalorder %s23, 0
      %p155 = por %p153, %p154
      %s157 = sadd.s32 %s156, 1
      %p160 = scmp.eq.s32.totalorder %s17, 1
      %p161 = scmp.ne.s32.totalorder %s156, %s158
      %p162 = scmp.eq.s32.totalorder %s17, 0
      %p163 = por %p161, %p162
      %p164 = scmp.ne.s32.totalorder %s156, %s158
      %p165 = scmp.eq.s32.totalorder %s22, 1
      %p166 = por %p164, %p165
      %p167 = scmp.ne.s32.totalorder %s158, %s159
      %p168 = scmp.eq.s32.totalorder %s22, 0
      %p169 = por %p167, %p168
      %p170 = scmp.ne.s32.totalorder %s158, %s159
      %p171 = scmp.eq.s32.totalorder %s23, 1
      %p172 = por %p170, %p171
      %p174 = scmp.ne.s32.totalorder %s159, %s173
      %p175 = scmp.eq.s32.totalorder %s23, 0
      %p176 = por %p174, %p175
      %s177 = ssub.s32 %s17, %s24
      %p178 = scmp.eq.s32.totalorder %s177, 0
      %s180 = sadd.s32 %s179, 1
      %s181 = scalar_select %p178, %s179, %s180
      %p184 = pneg %p178
      %p185 = scmp.eq.s32.totalorder %s17, 1
      %p186 = por %p184, %p185
      %p187 = scmp.ne.s32.totalorder %s179, %s182
      %p188 = scmp.eq.s32.totalorder %s17, 0
      %p189 = por %p187, %p188
      %p190 = scmp.ne.s32.totalorder %s179, %s182
      %p191 = scmp.eq.s32.totalorder %s22, 1
      %p192 = por %p190, %p191
      %p193 = scmp.ne.s32.totalorder %s182, %s183
      %p194 = scmp.eq.s32.totalorder %s22, 0
      %p195 = por %p193, %p194
      %p196 = scmp.ne.s32.totalorder %s182, %s183
      %p197 = scmp.eq.s32.totalorder %s23, 1
      %p198 = por %p196, %p197
      %p200 = scmp.ne.s32.totalorder %s183, %s199
      %p201 = scmp.eq.s32.totalorder %s23, 0
      %p202 = por %p200, %p201
      %p203 = scmp.le.s32.totalorder 1, %s17
      %p204 = scmp.lt.s32.totalorder %s17, 3
      %p205 = pnand %p203, %p204
      %p206 = pneg %p205
      // Predicated region
      $region9: #{tpu_custom_call.1} parent=5 // pred_check
        _
      $region10: #{tpu_custom_call.1} parent=5 // pred_check_branch
        %208 = sbr.rel (%p205) target = $region12
      $region11: #{tpu_custom_call.1} parent=5 // pred_region
        %s209 = ssub.s32 %s17, 1
        // Predicated region
        $region13: #{tpu_custom_call.1} parent=11 // pred_check
          %p210 = pneg %p64
        $region14: #{tpu_custom_call.1} parent=11 // pred_check_branch
          %212 = sbr.rel (%p210) target = $region16
        $region15: #{tpu_custom_call.1} parent=11 // pred_region
          %s214 = ssub.s32 768, 768
          %215 = vsyncadd [#allocation7], %s214
          %s216 = sshll.u32 [#allocation6], 4
          %s217 = int_to_ptr.vmem [resolvable:$true] %s216
          %222 = dma.hbm_to_vmem [thread:$0]  %s1, 768, %s217, [#allocation7], 192, 192, 12
        $region16: #{tpu_custom_call.1} parent=11 // pred_fallthru
          _
        // Predicated region
        $region17: #{tpu_custom_call.1} parent=11 // pred_check
          %p223 = pneg %p85
        $region18: #{tpu_custom_call.1} parent=11 // pred_check_branch
          %225 = sbr.rel (%p223) target = $region20
        $region19: #{tpu_custom_call.1} parent=11 // pred_region
          _
        $region20: #{tpu_custom_call.1} parent=11 // pred_fallthru
          _
        // Predicated region
        $region21: #{tpu_custom_call.1} parent=11 // pred_check
          %p226 = pneg %p106
        $region22: #{tpu_custom_call.1} parent=11 // pred_check_branch
          %228 = sbr.rel (%p226) target = $region24
        $region23: #{tpu_custom_call.1} parent=11 // pred_region
          _
        $region24: #{tpu_custom_call.1} parent=11 // pred_fallthru
          _
        // Predicated region
        $region25: #{tpu_custom_call.1} parent=11 // pred_check
          %p229 = pneg %p127
        $region26: #{tpu_custom_call.1} parent=11 // pred_check_branch
          %231 = sbr.rel (%p229) target = $region28
        $region27: #{tpu_custom_call.1} parent=11 // pred_region
          _
        $region28: #{tpu_custom_call.1} parent=11 // pred_fallthru
          _
        // Predicated region
        $region29: #{tpu_custom_call.1} parent=11 // pred_check
          %p232 = pneg %p148
        $region30: #{tpu_custom_call.1} parent=11 // pred_check_branch
          %234 = sbr.rel (%p232) target = $region32
        $region31: #{tpu_custom_call.1} parent=11 // pred_region
          _
        $region32: #{tpu_custom_call.1} parent=11 // pred_fallthru
          _
        // Predicated region
        $region33: #{tpu_custom_call.1} parent=11 // pred_check
          %p235 = pneg %p169
        $region34: #{tpu_custom_call.1} parent=11 // pred_check_branch
          %237 = sbr.rel (%p235) target = $region36
        $region35: #{tpu_custom_call.1} parent=11 // pred_region
          _
        $region36: #{tpu_custom_call.1} parent=11 // pred_fallthru
          _
      $region12: #{tpu_custom_call.1} parent=5 // pred_fallthru
        _
      %p238 = scmp.lt.s32.totalorder %s17, 2
      // Predicated region
      $region37: #{tpu_custom_call.1} parent=5 // pred_check
        %p239 = pneg %p238
      $region38: #{tpu_custom_call.1} parent=5 // pred_check_branch
        %241 = sbr.rel (%p239) target = $region40
      $region39: #{tpu_custom_call.1} parent=5 // pred_region
        // Predicated region
        $region41: #{tpu_custom_call.1} parent=39 // pred_check
          %p242 = pneg %p37
        $region42: #{tpu_custom_call.1} parent=39 // pred_check_branch
          %244 = sbr.rel (%p242) target = $region44
        $region43: #{tpu_custom_call.1} parent=39 // pred_region
          %p245 = scmp.lt.s32.totalorder %s17, 1
          %s246 = scalar_select %p245, %s17, 1
          %s247 = smul.addr %s246, 12
          %s248 = smul.addr %s247, 4
          %s249 = scalar_lea.vmem %s0, %s248
        $region44: #{tpu_custom_call.1} parent=39 // pred_fallthru
          _
      $region40: #{tpu_custom_call.1} parent=5 // pred_fallthru
        _
      %p250 = scmp.le.s32.totalorder 1, %s17
      %p251 = scmp.lt.s32.totalorder %s17, 3
      %p252 = pnand %p250, %p251
      %p253 = pneg %p252
      // Predicated region
      $region45: #{tpu_custom_call.1} parent=5 // pred_check
        _
      $region46: #{tpu_custom_call.1} parent=5 // pred_check_branch
        %255 = sbr.rel (%p252) target = $region48
      $region47: #{tpu_custom_call.1} parent=5 // pred_region
        %s256 = ssub.s32 %s17, 1
        // Predicated region
        $region49: #{tpu_custom_call.1} parent=47 // pred_check
          %p257 = pneg %p64
        $region50: #{tpu_custom_call.1} parent=47 // pred_check_branch
          %259 = sbr.rel (%p257) target = $region52
        $region51: #{tpu_custom_call.1} parent=47 // pred_region
          %260 = dma.done [#allocation7], 768
        $region52: #{tpu_custom_call.1} parent=47 // pred_fallthru
          _
        %p261 = scmp.lt.s32.totalorder %s22, 1
        %s262 = scalar_select %p261, %s22, 1
        %s263 = smul.addr %s262, 12
        %s264 = smul.addr %s263, 4
        %s265 = scalar_lea.vmem %s0, %s264
        %p266 = pneg %p43
        %p267 = pneg %p40
        %p268 = pneg %p64
        %p269 = pneg %p61
        %p270 = pneg %p85
        %p271 = pneg %p82
        %p272 = pneg %p106
        %p273 = pneg %p103
        %p274 = pneg %p127
        %p275 = pneg %p124
        %p276 = pneg %p148
        %p277 = pneg %p145
        %p278 = pneg %p169
        %p279 = pneg %p166
        %p280 = pneg %p195
        %p281 = pneg %p192
        %s282 = sand.u32 %s182, 1
        %s283 = scalar_lea.sflag [#allocation8], %s282
        %s284 = sand.u32 %s182, 1
        %s285 = smul.addr %s284, 64
        %s286 = scalar_lea.vmem [#allocation9], %s285
        %p287 = scmp.lt.s32.totalorder %s22, 1
        %s288 = scalar_select %p287, %s22, 1
        %s289 = smul.addr %s288, 12
        %s290 = smul.addr %s289, 4
        %s291 = scalar_lea.vmem %s0, %s290
        %v293 = vlaneseq
        %v294 = vand.u32 %v293, 127
        %v295 = vadd.s32 %v294, 128
        %vm296 = vcmp.lt.s32.totalorder %v294, 0
        %v297 = vsub.s32 0, %v294
        %v298 = vsel %vm296, %v297, %v294
        %v299 = vshrl.u32 %v298, 4
        %v300 = vand.u32 %v298, 15
        %v301 = vsub.s32 0, %v300
        %v302 = vsel %vm296, %v301, %v300
        %vm303 = vcmp.lt.s32.totalorder %v295, 0
        %v304 = vsub.s32 0, %v295
        %v305 = vsel %vm303, %v304, %v295
        %v306 = vshrl.u32 %v305, 4
        %v307 = vand.u32 %v305, 15
        %v308 = vsub.s32 0, %v307
        %v309 = vsel %vm303, %v308, %v307
        %vm310 = vcmp.ne.s32.totalorder %v302, 0
        %vm311 = vcmp.ne.s32.totalorder %v309, 0
        %vm312 = vcmp.lt.s32.totalorder %v302, 0
        %vm313 = vcmp.lt.s32.totalorder %v309, 0
        %vm314 = vmand %vm312, %vm310
        %vm315 = vmand %vm313, %vm311
        %v316 = vadd.s32 %v302, 16
        %v317 = vadd.s32 %v309, 16
        %v318 = vsel %vm314, %v316, %v302
        %v319 = vsel %vm315, %v317, %v309
        %vm320 = vcmp.ne.s32.totalorder %v318, 0
        %vm321 = vcmp.ne.s32.totalorder %v319, 0
        %v322 = vsel %vm320, 1, 0
        %v323 = vsel %vm321, 1, 0
        %v324 = vcvt.s32.f32 %v322
        %v325 = vcvt.s32.f32 %v323
        %v326 = vpack.c.bf16 %v324, %v324
        %v327 = vpack.c.bf16 %v325, %v325
        %vm328 = vcmp.ne.s32.totalorder %v318, 15
        %vm329 = vcmp.ne.s32.totalorder %v319, 15
        %v330 = vsel %vm328, 1, 0
        %v331 = vsel %vm329, 1, 0
        %v332 = vcvt.s32.f32 %v330
        %v333 = vcvt.s32.f32 %v331
        %v334 = vpack.c.bf16 %v332, %v332
        %v335 = vpack.c.bf16 %v333, %v333
        %v336 = vld [vmem:[%s291] sm:$0xff]
        %v337 = vld [vmem:[%s291 + $0xc] sm:$0xff]
        %v338 = vld [vmem:[%s291 + $0x18] sm:$0xff]
        %v339 = vld [vmem:[%s291 + $0x24] sm:$0xff]
        %v342 = vunpack.c.l.b16 %v326
        %v343 = vunpack.c.l.b16 %v327
        %v344 = vpack.c.b16 %v343, %v342
        %v346 = vmul.bf16 %v336, %v344
        %v347 = vmul.bf16 %v337, %v344
        %v348 = vmul.bf16 %v338, %v344
        %v349 = vmul.bf16 %v339, %v344
        %350 = vst [vmem:[#allocation2] sm:$0xff] %v346
        %351 = vst [vmem:[#allocation2 + $0x8] sm:$0xff] %v347
        %352 = vst [vmem:[#allocation2 + $0x10] sm:$0xff] %v348
        %353 = vst [vmem:[#allocation2 + $0x18] sm:$0xff] %v349
        %v354 = vld [vmem:[%s291] sm:$0xff]
        %v355 = vld [vmem:[%s291 + $0x8] sm:$0xf]
        %v356 = vld [vmem:[%s291 + $0xc] sm:$0xff]
        %v357 = vld [vmem:[%s291 + $0x14] sm:$0xf]
        %v358 = vld [vmem:[%s291 + $0x18] sm:$0xff]
        %v359 = vld [vmem:[%s291 + $0x20] sm:$0xf]
        %v360 = vld [vmem:[%s291 + $0x24] sm:$0xff]
        %v361 = vld [vmem:[%s291 + $0x2c] sm:$0xf]
        %370 = vrot.lane.b32.xlu0 %v354, 127
        %v371 = vpop.permute.xlu0 %370
        %372 = vrot.lane.b32.xlu0 %v355, 127
        %v373 = vpop.permute.xlu0 %372
        %374 = vrot.lane.b32.xlu0 %v356, 127
        %v375 = vpop.permute.xlu0 %374
        %376 = vrot.lane.b32.xlu0 %v357, 127
        %v377 = vpop.permute.xlu0 %376
        %378 = vrot.lane.b32.xlu0 %v358, 127
        %v379 = vpop.permute.xlu0 %378
        %380 = vrot.lane.b32.xlu0 %v359, 127
        %v381 = vpop.permute.xlu0 %380
        %382 = vrot.lane.b32.xlu0 %v360, 127
        %v383 = vpop.permute.xlu0 %382
        %384 = vrot.lane.b32.xlu0 %v361, 127
        %v385 = vpop.permute.xlu0 %384
        %v386 = vrot.slane %v371, 4
        %v387 = vrot.slane %v373, 4
        %v388 = vrot.slane %v375, 4
        %v389 = vrot.slane %v377, 4
        %v390 = vrot.slane %v379, 4
        %v391 = vrot.slane %v381, 4
        %v392 = vrot.slane %v383, 4
        %v393 = vrot.slane %v385, 4
        %vm394 = vcmask 1043456
        %v395 = vsel %vm394, %v386, %v387
        %vm396 = vcmask 1039360
        %v397 = vsel %vm396, %v371, %v395
        %v398 = vsel %vm394, %v388, %v389
        %v399 = vsel %vm396, %v375, %v398
        %v400 = vsel %vm394, %v390, %v391
        %v401 = vsel %vm396, %v379, %v400
        %v402 = vsel %vm394, %v392, %v393
        %v403 = vsel %vm396, %v383, %v402
        %408 = vst [vmem:[#allocation2 + $0x20] sm:$0xff] %v397
        %409 = vst [vmem:[#allocation2 + $0x28] sm:$0xff] %v399
        %410 = vst [vmem:[#allocation2 + $0x30] sm:$0xff] %v401
        %411 = vst [vmem:[#allocation2 + $0x38] sm:$0xff] %v403
        %v412 = vld [vmem:[%s291] sm:$0xff]
        %v413 = vld [vmem:[%s291 + $0x8] sm:$0xf]
        %v414 = vld [vmem:[%s291 + $0xc] sm:$0xff]
        %v415 = vld [vmem:[%s291 + $0x14] sm:$0xf]
        %v416 = vld [vmem:[%s291 + $0x18] sm:$0xff]
        %v417 = vld [vmem:[%s291 + $0x20] sm:$0xf]
        %v418 = vld [vmem:[%s291 + $0x24] sm:$0xff]
        %v419 = vld [vmem:[%s291 + $0x2c] sm:$0xf]
        %v422 = vunpack.c.l.b16 %v334
        %v423 = vunpack.c.l.b16 %v335
        %v424 = vpack.c.b16 %v423, %v422
        %425 = vrot.lane.b32.xlu0 %v424, 2
        %v426 = vpop.permute.xlu0 %425
        %v427 = vrot.slane %v426, 4
        %vm428 = vcmask 15360
        %v429 = vsel %vm428, %v427, %v426
        %v432 = vmul.bf16 %v412, %v429
        %v433 = vmul.bf16 %v413, %v427
        %v434 = vmul.bf16 %v414, %v429
        %v435 = vmul.bf16 %v415, %v427
        %v436 = vmul.bf16 %v416, %v429
        %v437 = vmul.bf16 %v417, %v427
        %v438 = vmul.bf16 %v418, %v429
        %v439 = vmul.bf16 %v419, %v427
        %448 = vrot.lane.b32.xlu0 %v432, 126
        %v449 = vpop.permute.xlu0 %448
        %450 = vrot.lane.b32.xlu0 %v433, 126
        %v451 = vpop.permute.xlu0 %450
        %452 = vrot.lane.b32.xlu0 %v434, 126
        %v453 = vpop.permute.xlu0 %452
        %454 = vrot.lane.b32.xlu0 %v435, 126
        %v455 = vpop.permute.xlu0 %454
        %456 = vrot.lane.b32.xlu0 %v436, 126
        %v457 = vpop.permute.xlu0 %456
        %458 = vrot.lane.b32.xlu0 %v437, 126
        %v459 = vpop.permute.xlu0 %458
        %460 = vrot.lane.b32.xlu0 %v438, 126
        %v461 = vpop.permute.xlu0 %460
        %462 = vrot.lane.b32.xlu0 %v439, 126
        %v463 = vpop.permute.xlu0 %462
        %v464 = vrot.slane %v449, 4
        %v465 = vrot.slane %v451, 4
        %v466 = vrot.slane %v453, 4
        %v467 = vrot.slane %v455, 4
        %v468 = vrot.slane %v457, 4
        %v469 = vrot.slane %v459, 4
        %v470 = vrot.slane %v461, 4
        %v471 = vrot.slane %v463, 4
        %v472 = vsel %vm394, %v464, %v465
        %vm473 = vcmask 1031168
        %v474 = vsel %vm473, %v449, %v472
        %v475 = vsel %vm394, %v466, %v467
        %v476 = vsel %vm473, %v453, %v475
        %v477 = vsel %vm394, %v468, %v469
        %v478 = vsel %vm473, %v457, %v477
        %v479 = vsel %vm394, %v470, %v471
        %v480 = vsel %vm473, %v461, %v479
        %485 = vst [vmem:[#allocation2 + $0x40] sm:$0xff] %v474
        %486 = vst [vmem:[#allocation2 + $0x48] sm:$0xff] %v476
        %487 = vst [vmem:[#allocation2 + $0x50] sm:$0xff] %v478
        %488 = vst [vmem:[#allocation2 + $0x58] sm:$0xff] %v480
        %v489 = vld [vmem:[%s291] sm:$0xff]
        %v490 = vld [vmem:[%s291 + $0x8] sm:$0xf]
        %v491 = vld [vmem:[%s291 + $0xc] sm:$0xff]
        %v492 = vld [vmem:[%s291 + $0x14] sm:$0xf]
        %v493 = vld [vmem:[%s291 + $0x18] sm:$0xff]
        %v494 = vld [vmem:[%s291 + $0x20] sm:$0xf]
        %v495 = vld [vmem:[%s291 + $0x24] sm:$0xff]
        %v496 = vld [vmem:[%s291 + $0x2c] sm:$0xf]
        %497 = vrot.lane.b32.xlu0 %v344, 16
        %v498 = vpop.permute.xlu0 %497
        %v499 = vrot.slane %v498, 4
        %vm500 = vcmask 130048
        %v501 = vsel %vm500, %v499, %v498
        %v504 = vmul.bf16 %v489, %v501
        %v505 = vmul.bf16 %v490, %v499
        %v506 = vmul.bf16 %v491, %v501
        %v507 = vmul.bf16 %v492, %v499
        %v508 = vmul.bf16 %v493, %v501
        %v509 = vmul.bf16 %v494, %v499
        %v510 = vmul.bf16 %v495, %v501
        %v511 = vmul.bf16 %v496, %v499
        %520 = vrot.lane.b32.xlu0 %v504, 112
        %v521 = vpop.permute.xlu0 %520
        %522 = vrot.lane.b32.xlu0 %v505, 112
        %v523 = vpop.permute.xlu0 %522
        %524 = vrot.lane.b32.xlu0 %v506, 112
        %v525 = vpop.permute.xlu0 %524
        %526 = vrot.lane.b32.xlu0 %v507, 112
        %v527 = vpop.permute.xlu0 %526
        %528 = vrot.lane.b32.xlu0 %v508, 112
        %v529 = vpop.permute.xlu0 %528
        %530 = vrot.lane.b32.xlu0 %v509, 112
        %v531 = vpop.permute.xlu0 %530
        %532 = vrot.lane.b32.xlu0 %v510, 112
        %v533 = vpop.permute.xlu0 %532
        %534 = vrot.lane.b32.xlu0 %v511, 112
        %v535 = vpop.permute.xlu0 %534
        %v536 = vrot.slane %v521, 4
        %v537 = vrot.slane %v523, 4
        %v538 = vrot.slane %v525, 4
        %v539 = vrot.slane %v527, 4
        %v540 = vrot.slane %v529, 4
        %v541 = vrot.slane %v531, 4
        %v542 = vrot.slane %v533, 4
        %v543 = vrot.slane %v535, 4
        %v544 = vsel %vm394, %v536, %v537
        %vm545 = vcmask 916480
        %v546 = vsel %vm545, %v521, %v544
        %v547 = vsel %vm394, %v538, %v539
        %v548 = vsel %vm545, %v525, %v547
        %v549 = vsel %vm394, %v540, %v541
        %v550 = vsel %vm545, %v529, %v549
        %v551 = vsel %vm394, %v542, %v543
        %v552 = vsel %vm545, %v533, %v551
        %557 = vst [vmem:[#allocation2 + $0x60] sm:$0xff] %v546
        %558 = vst [vmem:[#allocation2 + $0x68] sm:$0xff] %v548
        %559 = vst [vmem:[#allocation2 + $0x70] sm:$0xff] %v550
        %560 = vst [vmem:[#allocation2 + $0x78] sm:$0xff] %v552
        %v561 = vld [vmem:[%s291] sm:$0xff]
        %v562 = vld [vmem:[%s291 + $0x8] sm:$0xf]
        %v563 = vld [vmem:[%s291 + $0xc] sm:$0xff]
        %v564 = vld [vmem:[%s291 + $0x14] sm:$0xf]
        %v565 = vld [vmem:[%s291 + $0x18] sm:$0xff]
        %v566 = vld [vmem:[%s291 + $0x20] sm:$0xf]
        %v567 = vld [vmem:[%s291 + $0x24] sm:$0xff]
        %v568 = vld [vmem:[%s291 + $0x2c] sm:$0xf]
        %577 = vrot.lane.b32.xlu0 %v561, 111
        %v578 = vpop.permute.xlu0 %577
        %579 = vrot.lane.b32.xlu0 %v562, 111
        %v580 = vpop.permute.xlu0 %579
        %581 = vrot.lane.b32.xlu0 %v563, 111
        %v582 = vpop.permute.xlu0 %581
        %583 = vrot.lane.b32.xlu0 %v564, 111
        %v584 = vpop.permute.xlu0 %583
        %585 = vrot.lane.b32.xlu0 %v565, 111
        %v586 = vpop.permute.xlu0 %585
        %587 = vrot.lane.b32.xlu0 %v566, 111
        %v588 = vpop.permute.xlu0 %587
        %589 = vrot.lane.b32.xlu0 %v567, 111
        %v590 = vpop.permute.xlu0 %589
        %591 = vrot.lane.b32.xlu0 %v568, 111
        %v592 = vpop.permute.xlu0 %591
        %v593 = vrot.slane %v578, 4
        %v594 = vrot.slane %v580, 4
        %v595 = vrot.slane %v582, 4
        %v596 = vrot.slane %v584, 4
        %v597 = vrot.slane %v586, 4
        %v598 = vrot.slane %v588, 4
        %v599 = vrot.slane %v590, 4
        %v600 = vrot.slane %v592, 4
        %v601 = vsel %vm394, %v593, %v594
        %vm602 = vcmask 908288
        %v603 = vsel %vm602, %v578, %v601
        %v604 = vsel %vm394, %v595, %v596
        %v605 = vsel %vm602, %v582, %v604
        %v606 = vsel %vm394, %v597, %v598
        %v607 = vsel %vm602, %v586, %v606
        %v608 = vsel %vm394, %v599, %v600
        %v609 = vsel %vm602, %v590, %v608
        %614 = vst [vmem:[#allocation2 + $0x80] sm:$0xff] %v603
        %615 = vst [vmem:[#allocation2 + $0x88] sm:$0xff] %v605
        %616 = vst [vmem:[#allocation2 + $0x90] sm:$0xff] %v607
        %617 = vst [vmem:[#allocation2 + $0x98] sm:$0xff] %v609
        %v618 = vld [vmem:[%s291] sm:$0xff]
        %v619 = vld [vmem:[%s291 + $0x8] sm:$0xf]
        %v620 = vld [vmem:[%s291 + $0xc] sm:$0xff]
        %v621 = vld [vmem:[%s291 + $0x14] sm:$0xf]
        %v622 = vld [vmem:[%s291 + $0x18] sm:$0xff]
        %v623 = vld [vmem:[%s291 + $0x20] sm:$0xf]
        %v624 = vld [vmem:[%s291 + $0x24] sm:$0xff]
        %v625 = vld [vmem:[%s291 + $0x2c] sm:$0xf]
        %626 = vrot.lane.b32.xlu0 %v424, 18
        %v627 = vpop.permute.xlu0 %626
        %v628 = vrot.slane %v627, 4
        %vm629 = vcmask 146432
        %v630 = vsel %vm629, %v628, %v627
        %v633 = vmul.bf16 %v618, %v630
        %v634 = vmul.bf16 %v619, %v628
        %v635 = vmul.bf16 %v620, %v630
        %v636 = vmul.bf16 %v621, %v628
        %v637 = vmul.bf16 %v622, %v630
        %v638 = vmul.bf16 %v623, %v628
        %v639 = vmul.bf16 %v624, %v630
        %v640 = vmul.bf16 %v625, %v628
        %649 = vrot.lane.b32.xlu0 %v633, 110
        %v650 = vpop.permute.xlu0 %649
        %651 = vrot.lane.b32.xlu0 %v634, 110
        %v652 = vpop.permute.xlu0 %651
        %653 = vrot.lane.b32.xlu0 %v635, 110
        %v654 = vpop.permute.xlu0 %653
        %655 = vrot.lane.b32.xlu0 %v636, 110
        %v656 = vpop.permute.xlu0 %655
        %657 = vrot.lane.b32.xlu0 %v637, 110
        %v658 = vpop.permute.xlu0 %657
        %659 = vrot.lane.b32.xlu0 %v638, 110
        %v660 = vpop.permute.xlu0 %659
        %661 = vrot.lane.b32.xlu0 %v639, 110
        %v662 = vpop.permute.xlu0 %661
        %663 = vrot.lane.b32.xlu0 %v640, 110
        %v664 = vpop.permute.xlu0 %663
        %v665 = vrot.slane %v650, 4
        %v666 = vrot.slane %v652, 4
        %v667 = vrot.slane %v654, 4
        %v668 = vrot.slane %v656, 4
        %v669 = vrot.slane %v658, 4
        %v670 = vrot.slane %v660, 4
        %v671 = vrot.slane %v662, 4
        %v672 = vrot.slane %v664, 4
        %v673 = vsel %vm394, %v665, %v666
        %vm674 = vcmask 900096
        %v675 = vsel %vm674, %v650, %v673
        %v676 = vsel %vm394, %v667, %v668
        %v677 = vsel %vm674, %v654, %v676
        %v678 = vsel %vm394, %v669, %v670
        %v679 = vsel %vm674, %v658, %v678
        %v680 = vsel %vm394, %v671, %v672
        %v681 = vsel %vm674, %v662, %v680
        %686 = vst [vmem:[#allocation2 + $0xa0] sm:$0xff] %v675
        %687 = vst [vmem:[#allocation2 + $0xa8] sm:$0xff] %v677
        %688 = vst [vmem:[#allocation2 + $0xb0] sm:$0xff] %v679
        %689 = vst [vmem:[#allocation2 + $0xb8] sm:$0xff] %v681
        %v690 = vld [vmem:[%s291] sm:$0xff]
        %v691 = vld [vmem:[%s291 + $0x8] sm:$0xf]
        %v692 = vld [vmem:[%s291 + $0xc] sm:$0xff]
        %v693 = vld [vmem:[%s291 + $0x14] sm:$0xf]
        %v694 = vld [vmem:[%s291 + $0x18] sm:$0xff]
        %v695 = vld [vmem:[%s291 + $0x20] sm:$0xf]
        %v696 = vld [vmem:[%s291 + $0x24] sm:$0xff]
        %v697 = vld [vmem:[%s291 + $0x2c] sm:$0xf]
        %698 = vrot.lane.b32.xlu0 %v344, 32
        %v699 = vpop.permute.xlu0 %698
        %v700 = vrot.slane %v699, 4
        %vm701 = vcmask 261120
        %v702 = vsel %vm701, %v700, %v699
        %v705 = vmul.bf16 %v690, %v702
        %v706 = vmul.bf16 %v691, %v700
        %v707 = vmul.bf16 %v692, %v702
        %v708 = vmul.bf16 %v693, %v700
        %v709 = vmul.bf16 %v694, %v702
        %v710 = vmul.bf16 %v695, %v700
        %v711 = vmul.bf16 %v696, %v702
        %v712 = vmul.bf16 %v697, %v700
        %721 = vrot.lane.b32.xlu0 %v705, 96
        %v722 = vpop.permute.xlu0 %721
        %723 = vrot.lane.b32.xlu0 %v706, 96
        %v724 = vpop.permute.xlu0 %723
        %725 = vrot.lane.b32.xlu0 %v707, 96
        %v726 = vpop.permute.xlu0 %725
        %727 = vrot.lane.b32.xlu0 %v708, 96
        %v728 = vpop.permute.xlu0 %727
        %729 = vrot.lane.b32.xlu0 %v709, 96
        %v730 = vpop.permute.xlu0 %729
        %731 = vrot.lane.b32.xlu0 %v710, 96
        %v732 = vpop.permute.xlu0 %731
        %733 = vrot.lane.b32.xlu0 %v711, 96
        %v734 = vpop.permute.xlu0 %733
        %735 = vrot.lane.b32.xlu0 %v712, 96
        %v736 = vpop.permute.xlu0 %735
        %v737 = vrot.slane %v722, 4
        %v738 = vrot.slane %v724, 4
        %v739 = vrot.slane %v726, 4
        %v740 = vrot.slane %v728, 4
        %v741 = vrot.slane %v730, 4
        %v742 = vrot.slane %v732, 4
        %v743 = vrot.slane %v734, 4
        %v744 = vrot.slane %v736, 4
        %v745 = vsel %vm394, %v737, %v738
        %vm746 = vcmask 785408
        %v747 = vsel %vm746, %v722, %v745
        %v748 = vsel %vm394, %v739, %v740
        %v749 = vsel %vm746, %v726, %v748
        %v750 = vsel %vm394, %v741, %v742
        %v751 = vsel %vm746, %v730, %v750
        %v752 = vsel %vm394, %v743, %v744
        %v753 = vsel %vm746, %v734, %v752
        %758 = vst [vmem:[#allocation2 + $0xc0] sm:$0xff] %v747
        %759 = vst [vmem:[#allocation2 + $0xc8] sm:$0xff] %v749
        %760 = vst [vmem:[#allocation2 + $0xd0] sm:$0xff] %v751
        %761 = vst [vmem:[#allocation2 + $0xd8] sm:$0xff] %v753
        %v762 = vld [vmem:[%s291] sm:$0xff]
        %v763 = vld [vmem:[%s291 + $0x8] sm:$0xf]
        %v764 = vld [vmem:[%s291 + $0xc] sm:$0xff]
        %v765 = vld [vmem:[%s291 + $0x14] sm:$0xf]
        %v766 = vld [vmem:[%s291 + $0x18] sm:$0xff]
        %v767 = vld [vmem:[%s291 + $0x20] sm:$0xf]
        %v768 = vld [vmem:[%s291 + $0x24] sm:$0xff]
        %v769 = vld [vmem:[%s291 + $0x2c] sm:$0xf]
        %778 = vrot.lane.b32.xlu0 %v762, 95
        %v779 = vpop.permute.xlu0 %778
        %780 = vrot.lane.b32.xlu0 %v763, 95
        %v781 = vpop.permute.xlu0 %780
        %782 = vrot.lane.b32.xlu0 %v764, 95
        %v783 = vpop.permute.xlu0 %782
        %784 = vrot.lane.b32.xlu0 %v765, 95
        %v785 = vpop.permute.xlu0 %784
        %786 = vrot.lane.b32.xlu0 %v766, 95
        %v787 = vpop.permute.xlu0 %786
        %788 = vrot.lane.b32.xlu0 %v767, 95
        %v789 = vpop.permute.xlu0 %788
        %790 = vrot.lane.b32.xlu0 %v768, 95
        %v791 = vpop.permute.xlu0 %790
        %792 = vrot.lane.b32.xlu0 %v769, 95
        %v793 = vpop.permute.xlu0 %792
        %v794 = vrot.slane %v779, 4
        %v795 = vrot.slane %v781, 4
        %v796 = vrot.slane %v783, 4
        %v797 = vrot.slane %v785, 4
        %v798 = vrot.slane %v787, 4
        %v799 = vrot.slane %v789, 4
        %v800 = vrot.slane %v791, 4
        %v801 = vrot.slane %v793, 4
        %v802 = vsel %vm394, %v794, %v795
        %vm803 = vcmask 777216
        %v804 = vsel %vm803, %v779, %v802
        %v805 = vsel %vm394, %v796, %v797
        %v806 = vsel %vm803, %v783, %v805
        %v807 = vsel %vm394, %v798, %v799
        %v808 = vsel %vm803, %v787, %v807
        %v809 = vsel %vm394, %v800, %v801
        %v810 = vsel %vm803, %v791, %v809
        %815 = vst [vmem:[#allocation2 + $0xe0] sm:$0xff] %v804
        %816 = vst [vmem:[#allocation2 + $0xe8] sm:$0xff] %v806
        %817 = vst [vmem:[#allocation2 + $0xf0] sm:$0xff] %v808
        %818 = vst [vmem:[#allocation2 + $0xf8] sm:$0xff] %v810
        %v819 = vld [vmem:[%s291] sm:$0xff]
        %v820 = vld [vmem:[%s291 + $0x8] sm:$0xf]
        %v821 = vld [vmem:[%s291 + $0xc] sm:$0xff]
        %v822 = vld [vmem:[%s291 + $0x14] sm:$0xf]
        %v823 = vld [vmem:[%s291 + $0x18] sm:$0xff]
        %v824 = vld [vmem:[%s291 + $0x20] sm:$0xf]
        %v825 = vld [vmem:[%s291 + $0x24] sm:$0xff]
        %v826 = vld [vmem:[%s291 + $0x2c] sm:$0xf]
        %827 = vrot.lane.b32.xlu0 %v424, 34
        %v828 = vpop.permute.xlu0 %827
        %v829 = vrot.slane %v828, 4
        %vm830 = vcmask 277504
        %v831 = vsel %vm830, %v829, %v828
        %v834 = vmul.bf16 %v819, %v831
        %v835 = vmul.bf16 %v820, %v829
        %v836 = vmul.bf16 %v821, %v831
        %v837 = vmul.bf16 %v822, %v829
        %v838 = vmul.bf16 %v823, %v831
        %v839 = vmul.bf16 %v824, %v829
        %v840 = vmul.bf16 %v825, %v831
        %v841 = vmul.bf16 %v826, %v829
        %850 = vrot.lane.b32.xlu0 %v834, 94
        %v851 = vpop.permute.xlu0 %850
        %852 = vrot.lane.b32.xlu0 %v835, 94
        %v853 = vpop.permute.xlu0 %852
        %854 = vrot.lane.b32.xlu0 %v836, 94
        %v855 = vpop.permute.xlu0 %854
        %856 = vrot.lane.b32.xlu0 %v837, 94
        %v857 = vpop.permute.xlu0 %856
        %858 = vrot.lane.b32.xlu0 %v838, 94
        %v859 = vpop.permute.xlu0 %858
        %860 = vrot.lane.b32.xlu0 %v839, 94
        %v861 = vpop.permute.xlu0 %860
        %862 = vrot.lane.b32.xlu0 %v840, 94
        %v863 = vpop.permute.xlu0 %862
        %864 = vrot.lane.b32.xlu0 %v841, 94
        %v865 = vpop.permute.xlu0 %864
        %v866 = vrot.slane %v851, 4
        %v867 = vrot.slane %v853, 4
        %v868 = vrot.slane %v855, 4
        %v869 = vrot.slane %v857, 4
        %v870 = vrot.slane %v859, 4
        %v871 = vrot.slane %v861, 4
        %v872 = vrot.slane %v863, 4
        %v873 = vrot.slane %v865, 4
        %v874 = vsel %vm394, %v866, %v867
        %vm875 = vcmask 769024
        %v876 = vsel %vm875, %v851, %v874
        %v877 = vsel %vm394, %v868, %v869
        %v878 = vsel %vm875, %v855, %v877
        %v879 = vsel %vm394, %v870, %v871
        %v880 = vsel %vm875, %v859, %v879
        %v881 = vsel %vm394, %v872, %v873
        %v882 = vsel %vm875, %v863, %v881
        %887 = vst [vmem:[#allocation2 + $0x100] sm:$0xff] %v876
        %888 = vst [vmem:[#allocation2 + $0x108] sm:$0xff] %v878
        %889 = vst [vmem:[#allocation2 + $0x110] sm:$0xff] %v880
        %890 = vst [vmem:[#allocation2 + $0x118] sm:$0xff] %v882
        %v891 = vld [vmem:[#allocation6] sm:$0xff]
        %v892 = vld [vmem:[#allocation6 + $0x8] sm:$0xf]
        %v893 = vld [vmem:[#allocation6 + $0xc] sm:$0xff]
        %v894 = vld [vmem:[#allocation6 + $0x14] sm:$0xf]
        %v895 = vld [vmem:[#allocation6 + $0x18] sm:$0xff]
        %v896 = vld [vmem:[#allocation6 + $0x20] sm:$0xf]
        %v897 = vld [vmem:[#allocation6 + $0x24] sm:$0xff]
        %v898 = vld [vmem:[#allocation6 + $0x2c] sm:$0xf]
        %v899 = vld [vmem:[#allocation2] sm:$0xff]
        %v900 = vld [vmem:[#allocation2 + $0x8] sm:$0xff]
        %v901 = vld [vmem:[#allocation2 + $0x10] sm:$0xff]
        %v902 = vld [vmem:[#allocation2 + $0x18] sm:$0xff]
        %v903 = vld [vmem:[#allocation2 + $0x20] sm:$0xff]
        %v904 = vld [vmem:[#allocation2 + $0x28] sm:$0xff]
        %v905 = vld [vmem:[#allocation2 + $0x30] sm:$0xff]
        %v906 = vld [vmem:[#allocation2 + $0x38] sm:$0xff]
        %v907 = vld [vmem:[#allocation2 + $0x40] sm:$0xff]
        %v908 = vld [vmem:[#allocation2 + $0x48] sm:$0xff]
        %v909 = vld [vmem:[#allocation2 + $0x50] sm:$0xff]
        %v910 = vld [vmem:[#allocation2 + $0x58] sm:$0xff]
        %v911 = vld [vmem:[#allocation2 + $0x60] sm:$0xff]
        %v912 = vld [vmem:[#allocation2 + $0x68] sm:$0xff]
        %v913 = vld [vmem:[#allocation2 + $0x70] sm:$0xff]
        %v914 = vld [vmem:[#allocation2 + $0x78] sm:$0xff]
        %v915 = vld [vmem:[#allocation2 + $0x80] sm:$0xff]
        %v916 = vld [vmem:[#allocation2 + $0x88] sm:$0xff]
        %v917 = vld [vmem:[#allocation2 + $0x90] sm:$0xff]
        %v918 = vld [vmem:[#allocation2 + $0x98] sm:$0xff]
        %v919 = vld [vmem:[#allocation2 + $0xa0] sm:$0xff]
        %v920 = vld [vmem:[#allocation2 + $0xa8] sm:$0xff]
        %v921 = vld [vmem:[#allocation2 + $0xb0] sm:$0xff]
        %v922 = vld [vmem:[#allocation2 + $0xb8] sm:$0xff]
        %v923 = vld [vmem:[#allocation2 + $0xc0] sm:$0xff]
        %v924 = vld [vmem:[#allocation2 + $0xc8] sm:$0xff]
        %v925 = vld [vmem:[#allocation2 + $0xd0] sm:$0xff]
        %v926 = vld [vmem:[#allocation2 + $0xd8] sm:$0xff]
        %v927 = vld [vmem:[#allocation2 + $0xe0] sm:$0xff]
        %v928 = vld [vmem:[#allocation2 + $0xe8] sm:$0xff]
        %v929 = vld [vmem:[#allocation2 + $0xf0] sm:$0xff]
        %v930 = vld [vmem:[#allocation2 + $0xf8] sm:$0xff]
        %v931 = vld [vmem:[#allocation2 + $0x100] sm:$0xff]
        %v932 = vld [vmem:[#allocation2 + $0x108] sm:$0xff]
        %v933 = vld [vmem:[#allocation2 + $0x110] sm:$0xff]
        %v934 = vld [vmem:[#allocation2 + $0x118] sm:$0xff]
        %v935 = vld [vmem:[%s2] sm:$0xff]
        %v936 = vld [vmem:[%s2 + $0x8] sm:$0xff]
        %v937 = vld [vmem:[%s2 + $0x10] sm:$0xff]
        %v938 = vld [vmem:[%s2 + $0x18] sm:$0xff]
        %940 = vset.pattern.permute.xlu0 0
        %941 = vperm.xlu0 %940, %v935
        %v942 = vpop.permute.xlu0 %941
        %945 = vset.pattern.permute.xlu0 0
        %946 = vperm.xlu0 %945, %v936
        %v947 = vpop.permute.xlu0 %946
        %950 = vset.pattern.permute.xlu0 0
        %951 = vperm.xlu0 %950, %v937
        %v952 = vpop.permute.xlu0 %951
        %955 = vset.pattern.permute.xlu0 0
        %956 = vperm.xlu0 %955, %v938
        %v957 = vpop.permute.xlu0 %956
        %v967 = vunpack.c.l.b16 %v891
        %v968 = vunpack.c.h.b16 %v891
        %v969 = vunpack.c.l.b16 %v892
        %v970 = vunpack.c.l.b16 %v893
        %v971 = vunpack.c.h.b16 %v893
        %v972 = vunpack.c.l.b16 %v894
        %v973 = vunpack.c.l.b16 %v895
        %v974 = vunpack.c.h.b16 %v895
        %v975 = vunpack.c.l.b16 %v896
        %v976 = vunpack.c.l.b16 %v897
        %v977 = vunpack.c.h.b16 %v897
        %v978 = vunpack.c.l.b16 %v898
        %v979 = vpack.c.b16 %v970, %v967
        %v980 = vpack.c.b16 %v971, %v968
        %v981 = vpack.c.b16 %v972, %v969
        %v982 = vpack.c.b16 %v976, %v973
        %v983 = vpack.c.b16 %v977, %v974
        %v984 = vpack.c.b16 %v978, %v975
        %v1025 = vunpack.c.l.b16 %v899
        %v1026 = vunpack.c.h.b16 %v899
        %v1027 = vunpack.c.l.b16 %v900
        %v1028 = vunpack.c.h.b16 %v900
        %v1029 = vunpack.c.l.b16 %v901
        %v1030 = vunpack.c.h.b16 %v901
        %v1031 = vunpack.c.l.b16 %v902
        %v1032 = vunpack.c.h.b16 %v902
        %v1033 = vunpack.c.l.b16 %v903
        %v1034 = vunpack.c.h.b16 %v903
        %v1035 = vunpack.c.l.b16 %v904
        %v1036 = vunpack.c.h.b16 %v904
        %v1037 = vunpack.c.l.b16 %v905
        %v1038 = vunpack.c.h.b16 %v905
        %v1039 = vunpack.c.l.b16 %v906
        %v1040 = vunpack.c.h.b16 %v906
        %v1041 = vunpack.c.l.b16 %v907
        %v1042 = vunpack.c.h.b16 %v907
        %v1043 = vunpack.c.l.b16 %v908
        %v1044 = vunpack.c.h.b16 %v908
        %v1045 = vunpack.c.l.b16 %v909
        %v1046 = vunpack.c.h.b16 %v909
        %v1047 = vunpack.c.l.b16 %v910
        %v1048 = vunpack.c.h.b16 %v910
        %v1049 = vunpack.c.l.b16 %v911
        %v1050 = vunpack.c.h.b16 %v911
        %v1051 = vunpack.c.l.b16 %v912
        %v1052 = vunpack.c.h.b16 %v912
        %v1053 = vunpack.c.l.b16 %v913
        %v1054 = vunpack.c.h.b16 %v913
        %v1055 = vunpack.c.l.b16 %v914
        %v1056 = vunpack.c.h.b16 %v914
        %v1057 = vunpack.c.l.b16 %v915
        %v1058 = vunpack.c.h.b16 %v915
        %v1059 = vunpack.c.l.b16 %v916
        %v1060 = vunpack.c.h.b16 %v916
        %v1061 = vunpack.c.l.b16 %v917
        %v1062 = vunpack.c.h.b16 %v917
        %v1063 = vunpack.c.l.b16 %v918
        %v1064 = vunpack.c.h.b16 %v918
        %v1065 = vunpack.c.l.b16 %v919
        %v1066 = vunpack.c.h.b16 %v919
        %v1067 = vunpack.c.l.b16 %v920
        %v1068 = vunpack.c.h.b16 %v920
        %v1069 = vunpack.c.l.b16 %v921
        %v1070 = vunpack.c.h.b16 %v921
        %v1071 = vunpack.c.l.b16 %v922
        %v1072 = vunpack.c.h.b16 %v922
        %v1073 = vunpack.c.l.b16 %v923
        %v1074 = vunpack.c.h.b16 %v923
        %v1075 = vunpack.c.l.b16 %v924
        %v1076 = vunpack.c.h.b16 %v924
        %v1077 = vunpack.c.l.b16 %v925
        %v1078 = vunpack.c.h.b16 %v925
        %v1079 = vunpack.c.l.b16 %v926
        %v1080 = vunpack.c.h.b16 %v926
        %v1081 = vunpack.c.l.b16 %v927
        %v1082 = vunpack.c.h.b16 %v927
        %v1083 = vunpack.c.l.b16 %v928
        %v1084 = vunpack.c.h.b16 %v928
        %v1085 = vunpack.c.l.b16 %v929
        %v1086 = vunpack.c.h.b16 %v929
        %v1087 = vunpack.c.l.b16 %v930
        %v1088 = vunpack.c.h.b16 %v930
        %v1089 = vunpack.c.l.b16 %v931
        %v1090 = vunpack.c.h.b16 %v931
        %v1091 = vunpack.c.l.b16 %v932
        %v1092 = vunpack.c.h.b16 %v932
        %v1093 = vunpack.c.l.b16 %v933
        %v1094 = vunpack.c.h.b16 %v933
        %v1095 = vunpack.c.l.b16 %v934
        %v1096 = vunpack.c.h.b16 %v934
        %v1097 = vpack.c.b16 %v1027, %v1025
        %v1098 = vpack.c.b16 %v1028, %v1026
        %v1099 = vpack.c.b16 %v1031, %v1029
        %v1100 = vpack.c.b16 %v1032, %v1030
        %v1101 = vpack.c.b16 %v1035, %v1033
        %v1102 = vpack.c.b16 %v1036, %v1034
        %v1103 = vpack.c.b16 %v1039, %v1037
        %v1104 = vpack.c.b16 %v1040, %v1038
        %v1105 = vpack.c.b16 %v1043, %v1041
        %v1106 = vpack.c.b16 %v1044, %v1042
        %v1107 = vpack.c.b16 %v1047, %v1045
        %v1108 = vpack.c.b16 %v1048, %v1046
        %v1109 = vpack.c.b16 %v1051, %v1049
        %v1110 = vpack.c.b16 %v1052, %v1050
        %v1111 = vpack.c.b16 %v1055, %v1053
        %v1112 = vpack.c.b16 %v1056, %v1054
        %v1113 = vpack.c.b16 %v1059, %v1057
        %v1114 = vpack.c.b16 %v1060, %v1058
        %v1115 = vpack.c.b16 %v1063, %v1061
        %v1116 = vpack.c.b16 %v1064, %v1062
        %v1117 = vpack.c.b16 %v1067, %v1065
        %v1118 = vpack.c.b16 %v1068, %v1066
        %v1119 = vpack.c.b16 %v1071, %v1069
        %v1120 = vpack.c.b16 %v1072, %v1070
        %v1121 = vpack.c.b16 %v1075, %v1073
        %v1122 = vpack.c.b16 %v1076, %v1074
        %v1123 = vpack.c.b16 %v1079, %v1077
        %v1124 = vpack.c.b16 %v1080, %v1078
        %v1125 = vpack.c.b16 %v1083, %v1081
        %v1126 = vpack.c.b16 %v1084, %v1082
        %v1127 = vpack.c.b16 %v1087, %v1085
        %v1128 = vpack.c.b16 %v1088, %v1086
        %v1129 = vpack.c.b16 %v1091, %v1089
        %v1130 = vpack.c.b16 %v1092, %v1090
        %v1131 = vpack.c.b16 %v1095, %v1093
        %v1132 = vpack.c.b16 %v1096, %v1094
        %vm1169 = vcmask 261120
        %v1171 = vsel %vm1169, %v981, 0
        %v1174 = vsel %vm1169, %v984, 0
        %1176 = vmatprep.subr.bf16.mxu0 %v1112
        %1177 = vmatpush1.bf16.msra.mxu0 %v1111
        %1178 = vmatprep.subr.bf16.mxu0 %v1110
        %1179 = vmatpush1.bf16.msra.mxu0 %v1109
        %1180 = vmatprep.subr.bf16.mxu0 %v1108
        %1181 = vmatpush1.bf16.msra.mxu0 %v1107
        %1182 = vmatprep.subr.bf16.mxu0 %v1106
        %1183 = vmatpush1.bf16.msra.mxu0 %v1105
        %1184 = vmatprep.subr.bf16.mxu0 %v1104
        %1185 = vmatpush1.bf16.msra.mxu0 %v1103
        %1186 = vmatprep.subr.bf16.mxu0 %v1102
        %1187 = vmatpush1.bf16.msra.mxu0 %v1101
        %1188 = vmatprep.subr.bf16.mxu0 %v1100
        %1189 = vmatpush1.bf16.msra.mxu0 %v1099
        %1190 = vmatprep.subr.bf16.mxu0 %v1098
        %1191 = vmatpush1.bf16.msra.mxu0 %v1097
        %1192 = vmatprep.subr.bf16.mxu0 %v1128
        %1193 = vmatpush2.bf16.msra.mxu0 %v1127
        %1194 = vmatprep.subr.bf16.mxu0 %v1126
        %1195 = vmatpush2.bf16.msra.mxu0 %v1125
        %1196 = vmatprep.subr.bf16.mxu0 %v1124
        %1197 = vmatpush2.bf16.msra.mxu0 %v1123
        %1198 = vmatprep.subr.bf16.mxu0 %v1122
        %1199 = vmatpush2.bf16.msra.mxu0 %v1121
        %1200 = vmatprep.subr.bf16.mxu0 %v1120
        %1201 = vmatpush2.bf16.msra.mxu0 %v1119
        %1202 = vmatprep.subr.bf16.mxu0 %v1118
        %1203 = vmatpush2.bf16.msra.mxu0 %v1117
        %1204 = vmatprep.subr.bf16.mxu0 %v1116
        %1205 = vmatpush2.bf16.msra.mxu0 %v1115
        %1206 = vmatprep.subr.bf16.mxu0 %v1114
        %1207 = vmatpush2.bf16.msra.mxu0 %v1113
        %1208 = vmatprep.mubr.bf16.mxu0 %v980
        %1209 = vmatmul.mubr.bf16.gmra.mxu0 %v979
        %v1210 = vpop.f32.mrf.mxu0
        %v1211 = vadd.f32 %v942, %v1210
        %v1212 = vpop.f32.mrf.mxu0
        %v1213 = vadd.f32 %v942, %v1212
        %v1214 = vpop.f32.mrf.mxu0
        %v1215 = vadd.f32 %v947, %v1214
        %v1216 = vpop.f32.mrf.mxu0
        %v1217 = vadd.f32 %v947, %v1216
        %1218 = vmatprep.mubr.bf16.mxu0 %v983
        %1219 = vmatmul.mubr.bf16.gmra.mxu0 %v982
        %v1220 = vpop.f32.mrf.mxu0
        %v1221 = vadd.f32 %v952, %v1220
        %v1222 = vpop.f32.mrf.mxu0
        %v1223 = vadd.f32 %v952, %v1222
        %v1224 = vpop.f32.mrf.mxu0
        %v1225 = vadd.f32 %v957, %v1224
        %v1226 = vpop.f32.mrf.mxu0
        %v1227 = vadd.f32 %v957, %v1226
        %1228 = vdwg.mxu0
        %1229 = vmatprep.subr.bf16.mxu0 0
        %1230 = vmatpush1.bf16.msra.mxu0 0
        %1231 = vmatprep.subr.bf16.mxu0 0
        %1232 = vmatpush1.bf16.msra.mxu0 0
        %1233 = vmatprep.subr.bf16.mxu0 0
        %1234 = vmatpush1.bf16.msra.mxu0 0
        %1235 = vmatprep.subr.bf16.mxu0 0
        %1236 = vmatpush1.bf16.msra.mxu0 0
        %1237 = vmatprep.subr.bf16.mxu0 0
        %1238 = vmatpush1.bf16.msra.mxu0 0
        %1239 = vmatprep.subr.bf16.mxu0 0
        %1240 = vmatpush1.bf16.msra.mxu0 0
        %1241 = vmatprep.subr.bf16.mxu0 %v1132
        %1242 = vmatpush1.bf16.msra.mxu0 %v1131
        %1243 = vmatprep.subr.bf16.mxu0 %v1130
        %1244 = vmatpush1.bf16.msra.mxu0 %v1129
        %1245 = vmatprep.subr.bf16.mxu0 0
        %1246 = vmatpush2.bf16.msra.mxu0 0
        %1247 = vmatprep.subr.bf16.mxu0 0
        %1248 = vmatpush2.bf16.msra.mxu0 0
        %1249 = vmatprep.subr.bf16.mxu0 0
        %1250 = vmatpush2.bf16.msra.mxu0 0
        %1251 = vmatprep.subr.bf16.mxu0 0
        %1252 = vmatpush2.bf16.msra.mxu0 0
        %1253 = vmatprep.subr.bf16.mxu0 0
        %1254 = vmatpush2.bf16.msra.mxu0 0
        %1255 = vmatprep.subr.bf16.mxu0 0
        %1256 = vmatpush2.bf16.msra.mxu0 0
        %1257 = vmatprep.subr.bf16.mxu0 0
        %1258 = vmatpush2.bf16.msra.mxu0 0
        %1259 = vmatprep.subr.bf16.mxu0 0
        %1260 = vmatpush2.bf16.msra.mxu0 0
        %1261 = vmatprep.mubr.bf16.mxu0 0
        %1262 = vmatmul.mubr.bf16.gmra.mxu0 %v1171
        %v1263 = vpop.f32.mrf.mxu0
        %v1264 = vadd.f32 %v1211, %v1263
        %v1265 = vpop.f32.mrf.mxu0
        %v1266 = vadd.f32 %v1213, %v1265
        %v1267 = vpop.f32.mrf.mxu0
        %v1268 = vadd.f32 %v1215, %v1267
        %v1269 = vpop.f32.mrf.mxu0
        %v1270 = vadd.f32 %v1217, %v1269
        %1271 = vmatprep.mubr.bf16.mxu0 0
        %1272 = vmatmul.mubr.bf16.gmra.mxu0 %v1174
        %v1273 = vpop.f32.mrf.mxu0
        %v1274 = vadd.f32 %v1221, %v1273
        %v1275 = vpop.f32.mrf.mxu0
        %v1276 = vadd.f32 %v1223, %v1275
        %v1277 = vpop.f32.mrf.mxu0
        %v1278 = vadd.f32 %v1225, %v1277
        %v1279 = vpop.f32.mrf.mxu0
        %v1280 = vadd.f32 %v1227, %v1279
        %1281 = vdwg.mxu0
        %1282 = vst [vmem:[#allocation3] sm:$0xff] %v1264
        %1283 = vst [vmem:[#allocation3 + $0x8] sm:$0xff] %v1266
        %1284 = vst [vmem:[#allocation3 + $0x10] sm:$0xff] %v1268
        %1285 = vst [vmem:[#allocation3 + $0x18] sm:$0xff] %v1270
        %1286 = vst [vmem:[#allocation3 + $0x20] sm:$0xff] %v1274
        %1287 = vst [vmem:[#allocation3 + $0x28] sm:$0xff] %v1276
        %1288 = vst [vmem:[#allocation3 + $0x30] sm:$0xff] %v1278
        %1289 = vst [vmem:[#allocation3 + $0x38] sm:$0xff] %v1280
        %v1290 = vpack.c.bf16 %v1268, %v1264
        %v1291 = vpack.c.bf16 %v1270, %v1266
        %v1292 = vpack.c.bf16 %v1278, %v1274
        %v1293 = vpack.c.bf16 %v1280, %v1276
        %v1298 = vunpack.c.l.b16 %v1290
        %v1299 = vunpack.c.l.b16 %v1291
        %v1300 = vunpack.c.h.b16 %v1290
        %v1301 = vunpack.c.h.b16 %v1291
        %v1302 = vunpack.c.l.b16 %v1292
        %v1303 = vunpack.c.l.b16 %v1293
        %v1304 = vunpack.c.h.b16 %v1292
        %v1305 = vunpack.c.h.b16 %v1293
        %v1306 = vpack.c.b16 %v1299, %v1298
        %v1307 = vpack.c.b16 %v1301, %v1300
        %v1308 = vpack.c.b16 %v1303, %v1302
        %v1309 = vpack.c.b16 %v1305, %v1304
        %1314 = vst [vmem:[#allocation4] sm:$0xff] %v1306
        %1315 = vst [vmem:[#allocation4 + $0x8] sm:$0xff] %v1307
        %1316 = vst [vmem:[#allocation4 + $0x10] sm:$0xff] %v1308
        %1317 = vst [vmem:[#allocation4 + $0x18] sm:$0xff] %v1309
        %v1318 = vadd.f32 %v1264, %v1266
        %1319 = vadd.xlane.f32.xlu0 %v1318
        %v1320 = vpop.xlane.xlu0 %1319
        %v1321 = vadd.f32 %v1268, %v1270
        %1322 = vadd.xlane.f32.xlu0 %v1321
        %v1323 = vpop.xlane.xlu0 %1322
        %v1324 = vadd.f32 %v1274, %v1276
        %1325 = vadd.xlane.f32.xlu0 %v1324
        %v1326 = vpop.xlane.xlu0 %1325
        %v1327 = vadd.f32 %v1278, %v1280
        %1328 = vadd.xlane.f32.xlu0 %v1327
        %v1329 = vpop.xlane.xlu0 %1328
        %v1330 = vrcp.pop 256.0
        %v1331 = vmul.f32 %v1320, %v1330
        %v1332 = vmul.f32 %v1323, %v1330
        %v1333 = vmul.f32 %v1326, %v1330
        %v1334 = vmul.f32 %v1329, %v1330
        %v1335 = vld [vmem:[%s3] sm:$0x3]
        %v1336 = vld [vmem:[%s4] sm:$0x3]
        %v1338 = vsel %vm1169, %v1335, 0
        %1340 = vmatprep.subr.mxu0 0.0
        %1341 = vmatpush1.msra.mxu0 0.0
        %1342 = vmatprep.subr.mxu0 0.0
        %1343 = vmatpush1.msra.mxu0 0.0
        %1344 = vmatprep.subr.mxu0 0.0
        %1345 = vmatpush1.msra.mxu0 0.0
        %1346 = vmatprep.subr.mxu0 0.0
        %1347 = vmatpush1.msra.mxu0 0.0
        %1348 = vmatprep.subr.mxu0 0.0
        %1349 = vmatpush1.msra.mxu0 0.0
        %1350 = vmatprep.subr.mxu0 0.0
        %1351 = vmatpush1.msra.mxu0 0.0
        %1352 = vmatprep.subr.mxu0 0.0
        %1353 = vmatpush1.msra.mxu0 0.0
        %1354 = vmatprep.subr.mxu0 0.0
        %1355 = vmatpush1.msra.mxu0 0.0
        %1356 = vmatprep.subr.mxu0 0.0
        %1357 = vmatpush1.msra.mxu0 0.0
        %1358 = vmatprep.subr.mxu0 0.0
        %1359 = vmatpush1.msra.mxu0 0.0
        %1360 = vmatprep.subr.mxu0 0.0
        %1361 = vmatpush1.msra.mxu0 0.0
        %1362 = vmatprep.subr.mxu0 0.0
        %1363 = vmatpush1.msra.mxu0 0.0
        %1364 = vmatprep.subr.mxu0 0.0
        %1365 = vmatpush1.msra.mxu0 %v1334
        %1366 = vmatprep.subr.mxu0 0.0
        %1367 = vmatpush1.msra.mxu0 %v1333
        %1368 = vmatprep.subr.mxu0 0.0
        %1369 = vmatpush1.msra.mxu0 %v1332
        %1370 = vmatprep.subr.mxu0 0.0
        %1371 = vmatpush1.msra.mxu0 %v1331
        %1372 = vmatprep.subr.mxu0 0.0
        %1373 = vmatpush2.msra.mxu0 0.0
        %1374 = vmatprep.subr.mxu0 0.0
        %1375 = vmatpush2.msra.mxu0 0.0
        %1376 = vmatprep.subr.mxu0 0.0
        %1377 = vmatpush2.msra.mxu0 0.0
        %1378 = vmatprep.subr.mxu0 0.0
        %1379 = vmatpush2.msra.mxu0 0.0
        %1380 = vmatprep.subr.mxu0 0.0
        %1381 = vmatpush2.msra.mxu0 0.0
        %1382 = vmatprep.subr.mxu0 0.0
        %1383 = vmatpush2.msra.mxu0 0.0
        %1384 = vmatprep.subr.mxu0 0.0
        %1385 = vmatpush2.msra.mxu0 0.0
        %1386 = vmatprep.subr.mxu0 0.0
        %1387 = vmatpush2.msra.mxu0 0.0
        %1388 = vmatprep.subr.mxu0 0.0
        %1389 = vmatpush2.msra.mxu0 0.0
        %1390 = vmatprep.subr.mxu0 0.0
        %1391 = vmatpush2.msra.mxu0 0.0
        %1392 = vmatprep.subr.mxu0 0.0
        %1393 = vmatpush2.msra.mxu0 0.0
        %1394 = vmatprep.subr.mxu0 0.0
        %1395 = vmatpush2.msra.mxu0 0.0
        %1396 = vmatprep.subr.mxu0 0.0
        %1397 = vmatpush2.msra.mxu0 0.0
        %1398 = vmatprep.subr.mxu0 0.0
        %1399 = vmatpush2.msra.mxu0 0.0
        %1400 = vmatprep.subr.mxu0 0.0
        %1401 = vmatpush2.msra.mxu0 0.0
        %1402 = vmatprep.subr.mxu0 0.0
        %1403 = vmatpush2.msra.mxu0 0.0
        %1404 = vmatprep.mubr.f32.mxu0 0.0
        %1405 = vmatmul.mubr.f32.gmra.mxu0 %v1338
        %v1406 = vpop.f32.mrf.mxu0
        %v1407 = vadd.f32 %v1336, %v1406
        %v1408 = vpop.f32.mrf.mxu0
        %1409 = vdwg.mxu0
        %v1410 = vmax.f32 %v1407, 0.0
        %v1411 = vld [vmem:[%s5] sm:$0xff]
        %v1412 = vld [vmem:[%s5 + $0x8] sm:$0xff]
        %v1413 = vld [vmem:[%s5 + $0x10] sm:$0xff]
        %v1414 = vld [vmem:[%s5 + $0x18] sm:$0xff]
        %v1415 = vld [vmem:[%s6] sm:$0xff]
        %v1416 = vld [vmem:[%s6 + $0x8] sm:$0xff]
        %v1417 = vld [vmem:[%s6 + $0x10] sm:$0xff]
        %v1418 = vld [vmem:[%s6 + $0x18] sm:$0xff]
        %vm1419 = vcmask 15360
        %v1421 = vsel %vm1419, %v1411, 0
        %v1424 = vsel %vm1419, %v1412, 0
        %v1427 = vsel %vm1419, %v1413, 0
        %v1430 = vsel %vm1419, %v1414, 0
        %vm1432 = vcmask 1041408
        %v1434 = vsel %vm1432, %v1410, 0
        %1436 = vmatprep.subr.mxu0 0.0
        %1437 = vmatpush1.msra.mxu0 0.0
        %1438 = vmatprep.subr.mxu0 0.0
        %1439 = vmatpush1.msra.mxu0 0.0
        %1440 = vmatprep.subr.mxu0 0.0
        %1441 = vmatpush1.msra.mxu0 0.0
        %1442 = vmatprep.subr.mxu0 0.0
        %1443 = vmatpush1.msra.mxu0 0.0
        %1444 = vmatprep.subr.mxu0 0.0
        %1445 = vmatpush1.msra.mxu0 0.0
        %1446 = vmatprep.subr.mxu0 0.0
        %1447 = vmatpush1.msra.mxu0 0.0
        %1448 = vmatprep.subr.mxu0 0.0
        %1449 = vmatpush1.msra.mxu0 0.0
        %1450 = vmatprep.subr.mxu0 0.0
        %1451 = vmatpush1.msra.mxu0 0.0
        %1452 = vmatprep.subr.mxu0 0.0
        %1453 = vmatpush1.msra.mxu0 0.0
        %1454 = vmatprep.subr.mxu0 0.0
        %1455 = vmatpush1.msra.mxu0 0.0
        %1456 = vmatprep.subr.mxu0 0.0
        %1457 = vmatpush1.msra.mxu0 0.0
        %1458 = vmatprep.subr.mxu0 0.0
        %1459 = vmatpush1.msra.mxu0 0.0
        %1460 = vmatprep.subr.mxu0 0.0
        %1461 = vmatpush1.msra.mxu0 0.0
        %1462 = vmatprep.subr.mxu0 0.0
        %1463 = vmatpush1.msra.mxu0 0.0
        %1464 = vmatprep.subr.mxu0 0.0
        %1465 = vmatpush1.msra.mxu0 0.0
        %1466 = vmatprep.subr.mxu0 0.0
        %1467 = vmatpush1.msra.mxu0 %v1434
        %1468 = vmatprep.subr.mxu0 0.0
        %1469 = vmatpush2.msra.mxu0 0.0
        %1470 = vmatprep.subr.mxu0 0.0
        %1471 = vmatpush2.msra.mxu0 0.0
        %1472 = vmatprep.subr.mxu0 0.0
        %1473 = vmatpush2.msra.mxu0 0.0
        %1474 = vmatprep.subr.mxu0 0.0
        %1475 = vmatpush2.msra.mxu0 0.0
        %1476 = vmatprep.subr.mxu0 0.0
        %1477 = vmatpush2.msra.mxu0 0.0
        %1478 = vmatprep.subr.mxu0 0.0
        %1479 = vmatpush2.msra.mxu0 0.0
        %1480 = vmatprep.subr.mxu0 0.0
        %1481 = vmatpush2.msra.mxu0 0.0
        %1482 = vmatprep.subr.mxu0 0.0
        %1483 = vmatpush2.msra.mxu0 0.0
        %1484 = vmatprep.subr.mxu0 0.0
        %1485 = vmatpush2.msra.mxu0 0.0
        %1486 = vmatprep.subr.mxu0 0.0
        %1487 = vmatpush2.msra.mxu0 0.0
        %1488 = vmatprep.subr.mxu0 0.0
        %1489 = vmatpush2.msra.mxu0 0.0
        %1490 = vmatprep.subr.mxu0 0.0
        %1491 = vmatpush2.msra.mxu0 0.0
        %1492 = vmatprep.subr.mxu0 0.0
        %1493 = vmatpush2.msra.mxu0 0.0
        %1494 = vmatprep.subr.mxu0 0.0
        %1495 = vmatpush2.msra.mxu0 0.0
        %1496 = vmatprep.subr.mxu0 0.0
        %1497 = vmatpush2.msra.mxu0 0.0
        %1498 = vmatprep.subr.mxu0 0.0
        %1499 = vmatpush2.msra.mxu0 0.0
        %1500 = vmatprep.mubr.f32.mxu0 0.0
        %1501 = vmatmul.mubr.f32.gmra.mxu0 %v1421
        %v1502 = vpop.f32.mrf.mxu0
        %v1503 = vadd.f32 %v1415, %v1502
        %v1504 = vpop.f32.mrf.mxu0
        %1505 = vmatprep.mubr.f32.mxu0 0.0
        %1506 = vmatmul.mubr.f32.gmra.mxu0 %v1424
        %v1507 = vpop.f32.mrf.mxu0
        %v1508 = vadd.f32 %v1416, %v1507
        %v1509 = vpop.f32.mrf.mxu0
        %1510 = vmatprep.mubr.f32.mxu0 0.0
        %1511 = vmatmul.mubr.f32.gmra.mxu0 %v1427
        %v1512 = vpop.f32.mrf.mxu0
        %v1513 = vadd.f32 %v1417, %v1512
        %v1514 = vpop.f32.mrf.mxu0
        %1515 = vmatprep.mubr.f32.mxu0 0.0
        %1516 = vmatmul.mubr.f32.gmra.mxu0 %v1430
        %v1517 = vpop.f32.mrf.mxu0
        %v1518 = vadd.f32 %v1418, %v1517
        %v1519 = vpop.f32.mrf.mxu0
        %1520 = vdwg.mxu0
        %v1521 = vxor.u32 %v1503, 2147483648
        %v1522 = vxor.u32 %v1508, 2147483648
        %v1523 = vxor.u32 %v1513, 2147483648
        %v1524 = vxor.u32 %v1518, 2147483648
        %v1525 = vmul.f32 %v1521, 1.442695
        %v1526 = vpow.pop %v1525
        %v1527 = vmul.f32 %v1522, 1.442695
        %v1528 = vpow.pop %v1527
        %v1529 = vmul.f32 %v1523, 1.442695
        %v1530 = vpow.pop %v1529
        %v1531 = vmul.f32 %v1524, 1.442695
        %v1532 = vpow.pop %v1531
        %v1533 = vadd.f32 %v1526, 1.0
        %v1534 = vadd.f32 %v1528, 1.0
        %v1535 = vadd.f32 %v1530, 1.0
        %v1536 = vadd.f32 %v1532, 1.0
        %v1537 = vrcp.pop %v1533
        %v1538 = vmul.f32 1.0, %v1537
        %v1539 = vrcp.pop %v1534
        %v1540 = vmul.f32 1.0, %v1539
        %v1541 = vrcp.pop %v1535
        %v1542 = vmul.f32 1.0, %v1541
        %v1543 = vrcp.pop %v1536
        %v1544 = vmul.f32 1.0, %v1543
        %1546 = vset.pattern.permute.xlu0 0
        %1547 = vperm.xlu0 %1546, %v1538
        %v1548 = vpop.permute.xlu0 %1547
        %1551 = vset.pattern.permute.xlu0 0
        %1552 = vperm.xlu0 %1551, %v1540
        %v1553 = vpop.permute.xlu0 %1552
        %1556 = vset.pattern.permute.xlu0 0
        %1557 = vperm.xlu0 %1556, %v1542
        %v1558 = vpop.permute.xlu0 %1557
        %1561 = vset.pattern.permute.xlu0 0
        %1562 = vperm.xlu0 %1561, %v1544
        %v1563 = vpop.permute.xlu0 %1562
        %v1565 = vmul.f32 %v1264, %v1548
        %v1566 = vmul.f32 %v1266, %v1548
        %v1567 = vmul.f32 %v1268, %v1553
        %v1568 = vmul.f32 %v1270, %v1553
        %v1569 = vmul.f32 %v1274, %v1558
        %v1570 = vmul.f32 %v1276, %v1558
        %v1571 = vmul.f32 %v1278, %v1563
        %v1572 = vmul.f32 %v1280, %v1563
        %v1573 = vpack.c.bf16 %v1567, %v1565
        %v1574 = vpack.c.bf16 %v1568, %v1566
        %v1575 = vpack.c.bf16 %v1571, %v1569
        %v1576 = vpack.c.bf16 %v1572, %v1570
        %v1581 = vunpack.c.l.b16 %v1573
        %v1582 = vunpack.c.l.b16 %v1574
        %v1583 = vunpack.c.h.b16 %v1573
        %v1584 = vunpack.c.h.b16 %v1574
        %v1585 = vunpack.c.l.b16 %v1575
        %v1586 = vunpack.c.l.b16 %v1576
        %v1587 = vunpack.c.h.b16 %v1575
        %v1588 = vunpack.c.h.b16 %v1576
        %v1589 = vpack.c.b16 %v1582, %v1581
        %v1590 = vpack.c.b16 %v1584, %v1583
        %v1591 = vpack.c.b16 %v1586, %v1585
        %v1592 = vpack.c.b16 %v1588, %v1587
        %1597 = vst [vmem:[#allocation5] sm:$0xff] %v1589
        %1598 = vst [vmem:[#allocation5 + $0x8] sm:$0xff] %v1590
        %1599 = vst [vmem:[#allocation5 + $0x10] sm:$0xff] %v1591
        %1600 = vst [vmem:[#allocation5 + $0x18] sm:$0xff] %v1592
        loop: start=0, step=1, limit=2
        $region53: #{tpu_custom_call.1} parent=47 // loop_pre_header
          _
        $region54: #{tpu_custom_call.1} parent=47 // loop_header
          %s1602 = sphi 0, %s1606
          %p1603 = scmp.ge.s32.totalorder %s1602, 2
        $region55: #{tpu_custom_call.1} parent=47 // loop_header_branch
          %1605 = sbr.rel (%p1603) target = $region59
        $region56: #{tpu_custom_call.1} parent=47 // loop_body
          %s1607 = smul.u32 %s1602, 128
          %s1608 = sshra.s32 %s1607, 7
          %s1609 = sand.u32 %s1607, 127
          %s1610 = smul.addr %s1608, 4
          %s1611 = scalar_lea.vmem [#allocation4], %s1610
          %v1612 = vld [vmem:[%s1611] sm:$0xf]
          %v1613 = vld [vmem:[%s1611 + $0x8] sm:$0xf]
          %v1614 = vld [vmem:[%s1611 + $0x10] sm:$0xf]
          %v1615 = vld [vmem:[%s1611 + $0x18] sm:$0xf]
          %v1616 = vld [vmem:[#allocation4] sm:$0xff]
          %v1617 = vld [vmem:[#allocation4 + $0x8] sm:$0xff]
          %v1618 = vld [vmem:[#allocation4 + $0x10] sm:$0xff]
          %v1619 = vld [vmem:[#allocation4 + $0x18] sm:$0xff]
          %v1624 = vunpack.c.l.b16 %v1616
          %v1625 = vunpack.c.h.b16 %v1616
          %v1626 = vunpack.c.l.b16 %v1617
          %v1627 = vunpack.c.h.b16 %v1617
          %v1628 = vunpack.c.l.b16 %v1618
          %v1629 = vunpack.c.h.b16 %v1618
          %v1630 = vunpack.c.l.b16 %v1619
          %v1631 = vunpack.c.h.b16 %v1619
          %v1632 = vpack.c.b16 %v1626, %v1624
          %v1633 = vpack.c.b16 %v1627, %v1625
          %v1634 = vpack.c.b16 %v1630, %v1628
          %v1635 = vpack.c.b16 %v1631, %v1629
          %1640 = vxpose.xlu0.c.b16.start [1/8] %v1632, 128
          %1641 = vxpose.xlu0.c.b16.cont [2/8] %v1634, 128
          %1642 = vxpose.xlu0.c.b16.cont [3/8] 0, 128
          %1643 = vxpose.xlu0.c.b16.cont [4/8] 0, 128
          %1644 = vxpose.xlu0.c.b16.cont [5/8] 0, 128
          %1645 = vxpose.xlu0.c.b16.cont [6/8] 0, 128
          %1646 = vxpose.xlu0.c.b16.cont [7/8] 0, 128
          %1647 = vxpose.xlu0.c.b16.end [8/8] 0, 128
          %v1648 = vpop.trf.xlu0
          %v1649 = vpop.trf.xlu0
          %v1650 = vpop.trf.xlu0
          %v1651 = vpop.trf.xlu0
          %v1652 = vpop.trf.xlu0
          %v1653 = vpop.trf.xlu0
          %v1654 = vpop.trf.xlu0
          %v1655 = vpop.trf.xlu0
          %1656 = vxpose.xlu0.c.b16.start [1/8] %v1633, 128
          %1657 = vxpose.xlu0.c.b16.cont [2/8] %v1635, 128
          %1658 = vxpose.xlu0.c.b16.cont [3/8] 0, 128
          %1659 = vxpose.xlu0.c.b16.cont [4/8] 0, 128
          %1660 = vxpose.xlu0.c.b16.cont [5/8] 0, 128
          %1661 = vxpose.xlu0.c.b16.cont [6/8] 0, 128
          %1662 = vxpose.xlu0.c.b16.cont [7/8] 0, 128
          %1663 = vxpose.xlu0.c.b16.end [8/8] 0, 128
          %v1664 = vpop.trf.xlu0
          %v1665 = vpop.trf.xlu0
          %v1666 = vpop.trf.xlu0
          %v1667 = vpop.trf.xlu0
          %v1668 = vpop.trf.xlu0
          %v1669 = vpop.trf.xlu0
          %v1670 = vpop.trf.xlu0
          %v1671 = vpop.trf.xlu0
          %v1676 = vunpack.c.l.b16 %v1612
          %v1677 = vunpack.c.l.b16 %v1613
          %v1678 = vunpack.c.l.b16 %v1614
          %v1679 = vunpack.c.l.b16 %v1615
          %v1680 = vpack.c.b16 %v1677, %v1676
          %v1681 = vpack.c.b16 %v1679, %v1678
          %v1685 = vsel %vm1169, %v1648, 0
          %v1688 = vsel %vm1169, %v1649, 0
          %v1691 = vsel %vm1169, %v1650, 0
          %v1694 = vsel %vm1169, %v1651, 0
          %v1697 = vsel %vm1169, %v1652, 0
          %v1700 = vsel %vm1169, %v1653, 0
          %v1703 = vsel %vm1169, %v1654, 0
          %v1706 = vsel %vm1169, %v1655, 0
          %v1709 = vsel %vm1169, %v1664, 0
          %v1712 = vsel %vm1169, %v1665, 0
          %v1715 = vsel %vm1169, %v1666, 0
          %v1718 = vsel %vm1169, %v1667, 0
          %v1721 = vsel %vm1169, %v1668, 0
          %v1724 = vsel %vm1169, %v1669, 0
          %v1727 = vsel %vm1169, %v1670, 0
          %v1730 = vsel %vm1169, %v1671, 0
          %1732 = vmatprep.subr.bf16.mxu0 0
          %1733 = vmatpush1.bf16.msra.mxu0 0
          %1734 = vmatprep.subr.bf16.mxu0 0
          %1735 = vmatpush1.bf16.msra.mxu0 0
          %1736 = vmatprep.subr.bf16.mxu0 0
          %1737 = vmatpush1.bf16.msra.mxu0 0
          %1738 = vmatprep.subr.bf16.mxu0 0
          %1739 = vmatpush1.bf16.msra.mxu0 0
          %1740 = vmatprep.subr.bf16.mxu0 0
          %1741 = vmatpush1.bf16.msra.mxu0 0
          %1742 = vmatprep.subr.bf16.mxu0 0
          %1743 = vmatpush1.bf16.msra.mxu0 0
          %1744 = vmatprep.subr.bf16.mxu0 0
          %1745 = vmatpush1.bf16.msra.mxu0 %v1681
          %1746 = vmatprep.subr.bf16.mxu0 0
          %1747 = vmatpush1.bf16.msra.mxu0 %v1680
          %1748 = vmatprep.subr.bf16.mxu0 0
          %1749 = vmatpush2.bf16.msra.mxu0 0
          %1750 = vmatprep.subr.bf16.mxu0 0
          %1751 = vmatpush2.bf16.msra.mxu0 0
          %1752 = vmatprep.subr.bf16.mxu0 0
          %1753 = vmatpush2.bf16.msra.mxu0 0
          %1754 = vmatprep.subr.bf16.mxu0 0
          %1755 = vmatpush2.bf16.msra.mxu0 0
          %1756 = vmatprep.subr.bf16.mxu0 0
          %1757 = vmatpush2.bf16.msra.mxu0 0
          %1758 = vmatprep.subr.bf16.mxu0 0
          %1759 = vmatpush2.bf16.msra.mxu0 0
          %1760 = vmatprep.subr.bf16.mxu0 0
          %1761 = vmatpush2.bf16.msra.mxu0 0
          %1762 = vmatprep.subr.bf16.mxu0 0
          %1763 = vmatpush2.bf16.msra.mxu0 0
          %1764 = vmatprep.mubr.bf16.mxu0 0
          %1765 = vmatmul.mubr.bf16.gmra.mxu0 %v1685
          %v1766 = vpop.f32.mrf.mxu0
          %v1767 = vadd.f32 0.0, %v1766
          %v1768 = vpop.f32.mrf.mxu0
          %v1769 = vpop.f32.mrf.mxu0
          %v1770 = vadd.f32 0.0, %v1769
          %v1771 = vpop.f32.mrf.mxu0
          %1772 = vmatprep.mubr.bf16.mxu0 0
          %1773 = vmatmul.mubr.bf16.gmra.mxu0 %v1688
          %v1774 = vpop.f32.mrf.mxu0
          %v1775 = vadd.f32 0.0, %v1774
          %v1776 = vpop.f32.mrf.mxu0
          %v1777 = vpop.f32.mrf.mxu0
          %v1778 = vadd.f32 0.0, %v1777
          %v1779 = vpop.f32.mrf.mxu0
          %1780 = vmatprep.mubr.bf16.mxu0 0
          %1781 = vmatmul.mubr.bf16.gmra.mxu0 %v1691
          %v1782 = vpop.f32.mrf.mxu0
          %v1783 = vadd.f32 0.0, %v1782
          %v1784 = vpop.f32.mrf.mxu0
          %v1785 = vpop.f32.mrf.mxu0
          %v1786 = vadd.f32 0.0, %v1785
          %v1787 = vpop.f32.mrf.mxu0
          %1788 = vmatprep.mubr.bf16.mxu0 0
          %1789 = vmatmul.mubr.bf16.gmra.mxu0 %v1694
          %v1790 = vpop.f32.mrf.mxu0
          %v1791 = vadd.f32 0.0, %v1790
          %v1792 = vpop.f32.mrf.mxu0
          %v1793 = vpop.f32.mrf.mxu0
          %v1794 = vadd.f32 0.0, %v1793
          %v1795 = vpop.f32.mrf.mxu0
          %1796 = vmatprep.mubr.bf16.mxu0 0
          %1797 = vmatmul.mubr.bf16.gmra.mxu0 %v1697
          %v1798 = vpop.f32.mrf.mxu0
          %v1799 = vadd.f32 0.0, %v1798
          %v1800 = vpop.f32.mrf.mxu0
          %v1801 = vpop.f32.mrf.mxu0
          %v1802 = vadd.f32 0.0, %v1801
          %v1803 = vpop.f32.mrf.mxu0
          %1804 = vmatprep.mubr.bf16.mxu0 0
          %1805 = vmatmul.mubr.bf16.gmra.mxu0 %v1700
          %v1806 = vpop.f32.mrf.mxu0
          %v1807 = vadd.f32 0.0, %v1806
          %v1808 = vpop.f32.mrf.mxu0
          %v1809 = vpop.f32.mrf.mxu0
          %v1810 = vadd.f32 0.0, %v1809
          %v1811 = vpop.f32.mrf.mxu0
          %1812 = vmatprep.mubr.bf16.mxu0 0
          %1813 = vmatmul.mubr.bf16.gmra.mxu0 %v1703
          %v1814 = vpop.f32.mrf.mxu0
          %v1815 = vadd.f32 0.0, %v1814
          %v1816 = vpop.f32.mrf.mxu0
          %v1817 = vpop.f32.mrf.mxu0
          %v1818 = vadd.f32 0.0, %v1817
          %v1819 = vpop.f32.mrf.mxu0
          %1820 = vmatprep.mubr.bf16.mxu0 0
          %1821 = vmatmul.mubr.bf16.gmra.mxu0 %v1706
          %v1822 = vpop.f32.mrf.mxu0
          %v1823 = vadd.f32 0.0, %v1822
          %v1824 = vpop.f32.mrf.mxu0
          %v1825 = vpop.f32.mrf.mxu0
          %v1826 = vadd.f32 0.0, %v1825
          %v1827 = vpop.f32.mrf.mxu0
          %1828 = vmatprep.mubr.bf16.mxu0 0
          %1829 = vmatmul.mubr.bf16.gmra.mxu0 %v1709
          %v1830 = vpop.f32.mrf.mxu0
          %v1831 = vadd.f32 0.0, %v1830
          %v1832 = vpop.f32.mrf.mxu0
          %v1833 = vpop.f32.mrf.mxu0
          %v1834 = vadd.f32 0.0, %v1833
          %v1835 = vpop.f32.mrf.mxu0
          %1836 = vmatprep.mubr.bf16.mxu0 0
          %1837 = vmatmul.mubr.bf16.gmra.mxu0 %v1712
          %v1838 = vpop.f32.mrf.mxu0
          %v1839 = vadd.f32 0.0, %v1838
          %v1840 = vpop.f32.mrf.mxu0
          %v1841 = vpop.f32.mrf.mxu0
          %v1842 = vadd.f32 0.0, %v1841
          %v1843 = vpop.f32.mrf.mxu0
          %1844 = vmatprep.mubr.bf16.mxu0 0
          %1845 = vmatmul.mubr.bf16.gmra.mxu0 %v1715
          %v1846 = vpop.f32.mrf.mxu0
          %v1847 = vadd.f32 0.0, %v1846
          %v1848 = vpop.f32.mrf.mxu0
          %v1849 = vpop.f32.mrf.mxu0
          %v1850 = vadd.f32 0.0, %v1849
          %v1851 = vpop.f32.mrf.mxu0
          %1852 = vmatprep.mubr.bf16.mxu0 0
          %1853 = vmatmul.mubr.bf16.gmra.mxu0 %v1718
          %v1854 = vpop.f32.mrf.mxu0
          %v1855 = vadd.f32 0.0, %v1854
          %v1856 = vpop.f32.mrf.mxu0
          %v1857 = vpop.f32.mrf.mxu0
          %v1858 = vadd.f32 0.0, %v1857
          %v1859 = vpop.f32.mrf.mxu0
          %1860 = vmatprep.mubr.bf16.mxu0 0
          %1861 = vmatmul.mubr.bf16.gmra.mxu0 %v1721
          %v1862 = vpop.f32.mrf.mxu0
          %v1863 = vadd.f32 0.0, %v1862
          %v1864 = vpop.f32.mrf.mxu0
          %v1865 = vpop.f32.mrf.mxu0
          %v1866 = vadd.f32 0.0, %v1865
          %v1867 = vpop.f32.mrf.mxu0
          %1868 = vmatprep.mubr.bf16.mxu0 0
          %1869 = vmatmul.mubr.bf16.gmra.mxu0 %v1724
          %v1870 = vpop.f32.mrf.mxu0
          %v1871 = vadd.f32 0.0, %v1870
          %v1872 = vpop.f32.mrf.mxu0
          %v1873 = vpop.f32.mrf.mxu0
          %v1874 = vadd.f32 0.0, %v1873
          %v1875 = vpop.f32.mrf.mxu0
          %1876 = vmatprep.mubr.bf16.mxu0 0
          %1877 = vmatmul.mubr.bf16.gmra.mxu0 %v1727
          %v1878 = vpop.f32.mrf.mxu0
          %v1879 = vadd.f32 0.0, %v1878
          %v1880 = vpop.f32.mrf.mxu0
          %v1881 = vpop.f32.mrf.mxu0
          %v1882 = vadd.f32 0.0, %v1881
          %v1883 = vpop.f32.mrf.mxu0
          %1884 = vmatprep.mubr.bf16.mxu0 0
          %1885 = vmatmul.mubr.bf16.gmra.mxu0 %v1730
          %v1886 = vpop.f32.mrf.mxu0
          %v1887 = vadd.f32 0.0, %v1886
          %v1888 = vpop.f32.mrf.mxu0
          %v1889 = vpop.f32.mrf.mxu0
          %v1890 = vadd.f32 0.0, %v1889
          %v1891 = vpop.f32.mrf.mxu0
          %1892 = vdwg.mxu0
          %v1893 = vmax.f32 %v1767, %v1783
          %v1894 = vmax.f32 %v1770, %v1786
          %v1895 = vmax.f32 %v1775, %v1791
          %v1896 = vmax.f32 %v1778, %v1794
          %v1897 = vmax.f32 %v1893, %v1799
          %v1898 = vmax.f32 %v1894, %v1802
          %v1899 = vmax.f32 %v1895, %v1807
          %v1900 = vmax.f32 %v1896, %v1810
          %v1901 = vmax.f32 %v1897, %v1815
          %v1902 = vmax.f32 %v1898, %v1818
          %v1903 = vmax.f32 %v1899, %v1823
          %v1904 = vmax.f32 %v1900, %v1826
          %v1905 = vmax.f32 %v1901, %v1831
          %v1906 = vmax.f32 %v1902, %v1834
          %v1907 = vmax.f32 %v1903, %v1839
          %v1908 = vmax.f32 %v1904, %v1842
          %v1909 = vmax.f32 %v1905, %v1847
          %v1910 = vmax.f32 %v1906, %v1850
          %v1911 = vmax.f32 %v1907, %v1855
          %v1912 = vmax.f32 %v1908, %v1858
          %v1913 = vmax.f32 %v1909, %v1863
          %v1914 = vmax.f32 %v1910, %v1866
          %v1915 = vmax.f32 %v1911, %v1871
          %v1916 = vmax.f32 %v1912, %v1874
          %v1917 = vmax.f32 %v1913, %v1879
          %v1918 = vmax.f32 %v1914, %v1882
          %v1919 = vmax.f32 %v1915, %v1887
          %v1920 = vmax.f32 %v1916, %v1890
          %v1921 = vmax.f32 %v1917, %v1918
          %v1922 = vmax.f32 %v1919, %v1920
          %v1923 = vmax.f32 %v1921, %v1922
          %v1924 = vrot.slane %v1923, 4
          %v1925 = vmax.f32 %v1923, %v1924
          %v1926 = vrot.slane %v1925, 2
          %v1927 = vmax.f32 %v1925, %v1926
          %v1928 = vrot.slane %v1927, 1
          %v1929 = vmax.f32 %v1927, %v1928
          %v1930 = vsub.f32 %v1767, %v1929
          %v1931 = vsub.f32 %v1770, %v1929
          %v1932 = vsub.f32 %v1775, %v1929
          %v1933 = vsub.f32 %v1778, %v1929
          %v1934 = vsub.f32 %v1783, %v1929
          %v1935 = vsub.f32 %v1786, %v1929
          %v1936 = vsub.f32 %v1791, %v1929
          %v1937 = vsub.f32 %v1794, %v1929
          %v1938 = vsub.f32 %v1799, %v1929
          %v1939 = vsub.f32 %v1802, %v1929
          %v1940 = vsub.f32 %v1807, %v1929
          %v1941 = vsub.f32 %v1810, %v1929
          %v1942 = vsub.f32 %v1815, %v1929
          %v1943 = vsub.f32 %v1818, %v1929
          %v1944 = vsub.f32 %v1823, %v1929
          %v1945 = vsub.f32 %v1826, %v1929
          %v1946 = vsub.f32 %v1831, %v1929
          %v1947 = vsub.f32 %v1834, %v1929
          %v1948 = vsub.f32 %v1839, %v1929
          %v1949 = vsub.f32 %v1842, %v1929
          %v1950 = vsub.f32 %v1847, %v1929
          %v1951 = vsub.f32 %v1850, %v1929
          %v1952 = vsub.f32 %v1855, %v1929
          %v1953 = vsub.f32 %v1858, %v1929
          %v1954 = vsub.f32 %v1863, %v1929
          %v1955 = vsub.f32 %v1866, %v1929
          %v1956 = vsub.f32 %v1871, %v1929
          %v1957 = vsub.f32 %v1874, %v1929
          %v1958 = vsub.f32 %v1879, %v1929
          %v1959 = vsub.f32 %v1882, %v1929
          %v1960 = vsub.f32 %v1887, %v1929
          %v1961 = vsub.f32 %v1890, %v1929
          %v1962 = vmul.f32 %v1930, 1.442695
          %v1963 = vpow.pop %v1962
          %v1964 = vmul.f32 %v1931, 1.442695
          %v1965 = vpow.pop %v1964
          %v1966 = vmul.f32 %v1932, 1.442695
          %v1967 = vpow.pop %v1966
          %v1968 = vmul.f32 %v1933, 1.442695
          %v1969 = vpow.pop %v1968
          %v1970 = vmul.f32 %v1934, 1.442695
          %v1971 = vpow.pop %v1970
          %v1972 = vmul.f32 %v1935, 1.442695
          %v1973 = vpow.pop %v1972
          %v1974 = vmul.f32 %v1936, 1.442695
          %v1975 = vpow.pop %v1974
          %v1976 = vmul.f32 %v1937, 1.442695
          %v1977 = vpow.pop %v1976
          %v1978 = vmul.f32 %v1938, 1.442695
          %v1979 = vpow.pop %v1978
          %v1980 = vmul.f32 %v1939, 1.442695
          %v1981 = vpow.pop %v1980
          %v1982 = vmul.f32 %v1940, 1.442695
          %v1983 = vpow.pop %v1982
          %v1984 = vmul.f32 %v1941, 1.442695
          %v1985 = vpow.pop %v1984
          %v1986 = vmul.f32 %v1942, 1.442695
          %v1987 = vpow.pop %v1986
          %v1988 = vmul.f32 %v1943, 1.442695
          %v1989 = vpow.pop %v1988
          %v1990 = vmul.f32 %v1944, 1.442695
          %v1991 = vpow.pop %v1990
          %v1992 = vmul.f32 %v1945, 1.442695
          %v1993 = vpow.pop %v1992
          %v1994 = vmul.f32 %v1946, 1.442695
          %v1995 = vpow.pop %v1994
          %v1996 = vmul.f32 %v1947, 1.442695
          %v1997 = vpow.pop %v1996
          %v1998 = vmul.f32 %v1948, 1.442695
          %v1999 = vpow.pop %v1998
          %v2000 = vmul.f32 %v1949, 1.442695
          %v2001 = vpow.pop %v2000
          %v2002 = vmul.f32 %v1950, 1.442695
          %v2003 = vpow.pop %v2002
          %v2004 = vmul.f32 %v1951, 1.442695
          %v2005 = vpow.pop %v2004
          %v2006 = vmul.f32 %v1952, 1.442695
          %v2007 = vpow.pop %v2006
          %v2008 = vmul.f32 %v1953, 1.442695
          %v2009 = vpow.pop %v2008
          %v2010 = vmul.f32 %v1954, 1.442695
          %v2011 = vpow.pop %v2010
          %v2012 = vmul.f32 %v1955, 1.442695
          %v2013 = vpow.pop %v2012
          %v2014 = vmul.f32 %v1956, 1.442695
          %v2015 = vpow.pop %v2014
          %v2016 = vmul.f32 %v1957, 1.442695
          %v2017 = vpow.pop %v2016
          %v2018 = vmul.f32 %v1958, 1.442695
          %v2019 = vpow.pop %v2018
          %v2020 = vmul.f32 %v1959, 1.442695
          %v2021 = vpow.pop %v2020
          %v2022 = vmul.f32 %v1960, 1.442695
          %v2023 = vpow.pop %v2022
          %v2024 = vmul.f32 %v1961, 1.442695
          %v2025 = vpow.pop %v2024
          %v2026 = vpack.c.bf16 %v1965, %v1963
          %v2027 = vpack.c.bf16 %v1969, %v1967
          %v2028 = vpack.c.bf16 %v1973, %v1971
          %v2029 = vpack.c.bf16 %v1977, %v1975
          %v2030 = vpack.c.bf16 %v1981, %v1979
          %v2031 = vpack.c.bf16 %v1985, %v1983
          %v2032 = vpack.c.bf16 %v1989, %v1987
          %v2033 = vpack.c.bf16 %v1993, %v1991
          %v2034 = vpack.c.bf16 %v1997, %v1995
          %v2035 = vpack.c.bf16 %v2001, %v1999
          %v2036 = vpack.c.bf16 %v2005, %v2003
          %v2037 = vpack.c.bf16 %v2009, %v2007
          %v2038 = vpack.c.bf16 %v2013, %v2011
          %v2039 = vpack.c.bf16 %v2017, %v2015
          %v2040 = vpack.c.bf16 %v2021, %v2019
          %v2041 = vpack.c.bf16 %v2025, %v2023
          %v2042 = vunpack.c.l.bf16 %v2026
          %v2043 = vunpack.c.h.bf16 %v2026
          %v2044 = vunpack.c.l.bf16 %v2027
          %v2045 = vunpack.c.h.bf16 %v2027
          %v2046 = vunpack.c.l.bf16 %v2028
          %v2047 = vunpack.c.h.bf16 %v2028
          %v2048 = vunpack.c.l.bf16 %v2029
          %v2049 = vunpack.c.h.bf16 %v2029
          %v2050 = vunpack.c.l.bf16 %v2030
          %v2051 = vunpack.c.h.bf16 %v2030
          %v2052 = vunpack.c.l.bf16 %v2031
          %v2053 = vunpack.c.h.bf16 %v2031
          %v2054 = vunpack.c.l.bf16 %v2032
          %v2055 = vunpack.c.h.bf16 %v2032
          %v2056 = vunpack.c.l.bf16 %v2033
          %v2057 = vunpack.c.h.bf16 %v2033
          %v2058 = vunpack.c.l.bf16 %v2034
          %v2059 = vunpack.c.h.bf16 %v2034
          %v2060 = vunpack.c.l.bf16 %v2035
          %v2061 = vunpack.c.h.bf16 %v2035
          %v2062 = vunpack.c.l.bf16 %v2036
          %v2063 = vunpack.c.h.bf16 %v2036
          %v2064 = vunpack.c.l.bf16 %v2037
          %v2065 = vunpack.c.h.bf16 %v2037
          %v2066 = vunpack.c.l.bf16 %v2038
          %v2067 = vunpack.c.h.bf16 %v2038
          %v2068 = vunpack.c.l.bf16 %v2039
          %v2069 = vunpack.c.h.bf16 %v2039
          %v2070 = vunpack.c.l.bf16 %v2040
          %v2071 = vunpack.c.h.bf16 %v2040
          %v2072 = vunpack.c.l.bf16 %v2041
          %v2073 = vunpack.c.h.bf16 %v2041
          %v2074 = vadd.f32 %v2042, %v2043
          %v2075 = vadd.f32 %v2074, %v2044
          %v2076 = vadd.f32 %v2075, %v2045
          %v2077 = vadd.f32 %v2076, %v2046
          %v2078 = vadd.f32 %v2077, %v2047
          %v2079 = vadd.f32 %v2078, %v2048
          %v2080 = vadd.f32 %v2079, %v2049
          %v2081 = vadd.f32 %v2080, %v2050
          %v2082 = vadd.f32 %v2081, %v2051
          %v2083 = vadd.f32 %v2082, %v2052
          %v2084 = vadd.f32 %v2083, %v2053
          %v2085 = vadd.f32 %v2084, %v2054
          %v2086 = vadd.f32 %v2085, %v2055
          %v2087 = vadd.f32 %v2086, %v2056
          %v2088 = vadd.f32 %v2087, %v2057
          %v2089 = vadd.f32 %v2088, %v2058
          %v2090 = vadd.f32 %v2089, %v2059
          %v2091 = vadd.f32 %v2090, %v2060
          %v2092 = vadd.f32 %v2091, %v2061
          %v2093 = vadd.f32 %v2092, %v2062
          %v2094 = vadd.f32 %v2093, %v2063
          %v2095 = vadd.f32 %v2094, %v2064
          %v2096 = vadd.f32 %v2095, %v2065
          %v2097 = vadd.f32 %v2096, %v2066
          %v2098 = vadd.f32 %v2097, %v2067
          %v2099 = vadd.f32 %v2098, %v2068
          %v2100 = vadd.f32 %v2099, %v2069
          %v2101 = vadd.f32 %v2100, %v2070
          %v2102 = vadd.f32 %v2101, %v2071
          %v2103 = vadd.f32 %v2102, %v2072
          %v2104 = vadd.f32 %v2103, %v2073
          %v2105 = vrot.slane %v2104, 4
          %v2106 = vadd.f32 %v2104, %v2105
          %v2107 = vrot.slane %v2106, 2
          %v2108 = vadd.f32 %v2106, %v2107
          %v2109 = vrot.slane %v2108, 1
          %v2110 = vadd.f32 %v2108, %v2109
          %v2111 = vld [vmem:[#allocation5] sm:$0xff]
          %v2112 = vld [vmem:[#allocation5 + $0x8] sm:$0xff]
          %v2113 = vld [vmem:[#allocation5 + $0x10] sm:$0xff]
          %v2114 = vld [vmem:[#allocation5 + $0x18] sm:$0xff]
          %v2119 = vunpack.c.l.b16 %v2111
          %v2120 = vunpack.c.h.b16 %v2111
          %v2121 = vunpack.c.l.b16 %v2112
          %v2122 = vunpack.c.h.b16 %v2112
          %v2123 = vunpack.c.l.b16 %v2113
          %v2124 = vunpack.c.h.b16 %v2113
          %v2125 = vunpack.c.l.b16 %v2114
          %v2126 = vunpack.c.h.b16 %v2114
          %v2127 = vpack.c.b16 %v2121, %v2119
          %v2128 = vpack.c.b16 %v2122, %v2120
          %v2129 = vpack.c.b16 %v2125, %v2123
          %v2130 = vpack.c.b16 %v2126, %v2124
          %2135 = vmatprep.subr.bf16.mxu0 0
          %2136 = vmatpush1.bf16.msra.mxu0 %v2033
          %2137 = vmatprep.subr.bf16.mxu0 0
          %2138 = vmatpush1.bf16.msra.mxu0 %v2032
          %2139 = vmatprep.subr.bf16.mxu0 0
          %2140 = vmatpush1.bf16.msra.mxu0 %v2031
          %2141 = vmatprep.subr.bf16.mxu0 0
          %2142 = vmatpush1.bf16.msra.mxu0 %v2030
          %2143 = vmatprep.subr.bf16.mxu0 0
          %2144 = vmatpush1.bf16.msra.mxu0 %v2029
          %2145 = vmatprep.subr.bf16.mxu0 0
          %2146 = vmatpush1.bf16.msra.mxu0 %v2028
          %2147 = vmatprep.subr.bf16.mxu0 0
          %2148 = vmatpush1.bf16.msra.mxu0 %v2027
          %2149 = vmatprep.subr.bf16.mxu0 0
          %2150 = vmatpush1.bf16.msra.mxu0 %v2026
          %2151 = vmatprep.subr.bf16.mxu0 0
          %2152 = vmatpush2.bf16.msra.mxu0 %v2041
          %2153 = vmatprep.subr.bf16.mxu0 0
          %2154 = vmatpush2.bf16.msra.mxu0 %v2040
          %2155 = vmatprep.subr.bf16.mxu0 0
          %2156 = vmatpush2.bf16.msra.mxu0 %v2039
          %2157 = vmatprep.subr.bf16.mxu0 0
          %2158 = vmatpush2.bf16.msra.mxu0 %v2038
          %2159 = vmatprep.subr.bf16.mxu0 0
          %2160 = vmatpush2.bf16.msra.mxu0 %v2037
          %2161 = vmatprep.subr.bf16.mxu0 0
          %2162 = vmatpush2.bf16.msra.mxu0 %v2036
          %2163 = vmatprep.subr.bf16.mxu0 0
          %2164 = vmatpush2.bf16.msra.mxu0 %v2035
          %2165 = vmatprep.subr.bf16.mxu0 0
          %2166 = vmatpush2.bf16.msra.mxu0 %v2034
          %2167 = vmatprep.mubr.bf16.mxu0 %v2128
          %2168 = vmatmul.mubr.bf16.gmra.mxu0 %v2127
          %v2169 = vpop.f32.mrf.mxu0
          %v2170 = vadd.f32 0.0, %v2169
          %v2171 = vpop.f32.mrf.mxu0
          %v2172 = vpop.f32.mrf.mxu0
          %v2173 = vadd.f32 0.0, %v2172
          %v2174 = vpop.f32.mrf.mxu0
          %2175 = vmatprep.mubr.bf16.mxu0 %v2130
          %2176 = vmatmul.mubr.bf16.gmra.mxu0 %v2129
          %v2177 = vpop.f32.mrf.mxu0
          %v2178 = vadd.f32 0.0, %v2177
          %v2179 = vpop.f32.mrf.mxu0
          %v2180 = vpop.f32.mrf.mxu0
          %v2181 = vadd.f32 0.0, %v2180
          %v2182 = vpop.f32.mrf.mxu0
          %2183 = vdwg.mxu0
          %v2184 = vrcp.pop %v2110
          %v2185 = vmul.f32 %v2170, %v2184
          %v2186 = vmul.f32 %v2173, %v2184
          %v2187 = vmul.f32 %v2178, %v2184
          %v2188 = vmul.f32 %v2181, %v2184
          %s2189 = smul.addr %s1608, 8
          %s2190 = scalar_lea.vmem [#allocation3], %s2189
          %v2191 = vld [vmem:[%s2190] sm:$0xff]
          %v2192 = vld [vmem:[%s2190 + $0x10] sm:$0xff]
          %v2193 = vld [vmem:[%s2190 + $0x20] sm:$0xff]
          %v2194 = vld [vmem:[%s2190 + $0x30] sm:$0xff]
          %v2195 = vadd.f32 %v2185, %v2191
          %v2196 = vadd.f32 %v2186, %v2192
          %v2197 = vadd.f32 %v2187, %v2193
          %v2198 = vadd.f32 %v2188, %v2194
          %s2199 = smul.addr %s1608, 8
          %s2200 = scalar_lea.vmem %s286, %s2199 [#allocation9]
          %2201 = vst [vmem:[%s2200] sm:$0xff] %v2195
          %2202 = vst [vmem:[%s2200 + $0x10] sm:$0xff] %v2196
          %2203 = vst [vmem:[%s2200 + $0x20] sm:$0xff] %v2197
          %2204 = vst [vmem:[%s2200 + $0x30] sm:$0xff] %v2198
        $region57: #{tpu_custom_call.1} parent=47 // loop_footer
          %s1606 = sadd.s32 1, %s1602
        $region58: #{tpu_custom_call.1} parent=47 // loop_footer_branch
          %1601 = sbr.rel target = $region54
        $region59: #{tpu_custom_call.1} parent=47 // loop_exit
          _
        %s2205 = sand.u32 %s182, 1
        %s2206 = scalar_lea.sflag [#allocation8], %s2205
        %s2207 = sand.u32 %s182, 1
        %s2208 = smul.addr %s2207, 64
        %s2209 = scalar_lea.vmem [#allocation9], %s2208
        // Predicated region
        $region60: #{tpu_custom_call.1} parent=47 // pred_check
          %p2210 = pneg %p192
        $region61: #{tpu_custom_call.1} parent=47 // pred_check_branch
          %2212 = sbr.rel (%p2210) target = $region63
        $region62: #{tpu_custom_call.1} parent=47 // pred_region
          %s2214 = ssub.s32 1024, 1024
          %2215 = vsyncadd %s2206, %s2214
          %s2216 = smul.addr %s22, 8
          %s2217 = smul.addr %s2216, 128
          %s2218 = scalar_lea.hbm %s7, %s2217
          %s2219 = sshll.u32 %s2209, 4
          %s2220 = int_to_ptr.vmem [resolvable:$true] %s2219
          %2225 = dma.vmem_to_hbm [thread:$0]  %s2220, 1024, %s2218, %s2206, 256, 256, 16
        $region63: #{tpu_custom_call.1} parent=47 // pred_fallthru
          _
      $region48: #{tpu_custom_call.1} parent=5 // pred_fallthru
        _
      %p2226 = scmp.le.s32.totalorder 2, %s17
      // Predicated region
      $region64: #{tpu_custom_call.1} parent=5 // pred_check
        %p2227 = pneg %p2226
      $region65: #{tpu_custom_call.1} parent=5 // pred_check_branch
        %2229 = sbr.rel (%p2227) target = $region67
      $region66: #{tpu_custom_call.1} parent=5 // pred_region
        %s2230 = ssub.s32 %s17, 2
        // Predicated region
        $region68: #{tpu_custom_call.1} parent=66 // pred_check
          %p2231 = pneg %p198
        $region69: #{tpu_custom_call.1} parent=66 // pred_check_branch
          %2233 = sbr.rel (%p2231) target = $region71
        $region70: #{tpu_custom_call.1} parent=66 // pred_region
          %s2234 = sand.u32 %s183, 1
          %s2235 = scalar_lea.sflag [#allocation8], %s2234
          %s2236 = sand.u32 %s183, 1
          %s2237 = smul.addr %s2236, 64
          %s2238 = scalar_lea.vmem [#allocation9], %s2237
          %2239 = dma.done %s2235, 1024
        $region71: #{tpu_custom_call.1} parent=66 // pred_fallthru
          _
      $region67: #{tpu_custom_call.1} parent=5 // pred_fallthru
        _
    $region6: #{tpu_custom_call.1} parent=1 // loop_footer
      %s21 = sadd.s32 1, %s17
    $region7: #{tpu_custom_call.1} parent=1 // loop_footer_branch
      %16 = sbr.rel target = $region3
    $region8: #{tpu_custom_call.1} parent=1 // loop_exit
      _
    %2240 = vsyncpa [#allocation7], 1
    %s2241 = scalar_lea.sflag [#allocation7], 1
    %2242 = vsyncpa %s2241, 1
    %2243 = vsyncpa [#allocation8], 1
    %s2244 = scalar_lea.sflag [#allocation8], 1
    %2245 = vsyncpa %s2244, 1

</llo_original>
